<compile_context>
chip_gen: v6e
topology: v6e:2x2x1
jax: 0.10.0
libtpu: 0.0.40
codegen_flags: <defaults>
</compile_context>

<pallas_src>
import functools

import jax
import jax.numpy as jnp
from jax import lax
from jax.experimental import pallas as pl
from jax.experimental.pallas import tpu as pltpu


# ---------------------------------------------------------------------------
# Pass 1: online-softmax(k) . v^T context, fused with the out-projection.
# Emits M (c, hidden) per batch with M[:, h*d:(h+1)*d] = scale * Wout_h @ ctx_h^T.
# ---------------------------------------------------------------------------

def _context_kernel(x_ref, wqkv_ref, wout_ref, m_out_ref,
                    ctx_scr, max_scr, sum_scr,
                    *, heads, dim_head, scale, mxu_dtype):
    hidden = heads * dim_head
    j = pl.program_id(1)
    n_tiles = pl.num_programs(1)
    cdt = mxu_dtype

    @pl.when(j == 0)
    def _init():
        max_scr[...] = jnp.full(max_scr.shape, -jnp.inf, max_scr.dtype)
        sum_scr[...] = jnp.zeros(sum_scr.shape, sum_scr.dtype)
        ctx_scr[...] = jnp.zeros(ctx_scr.shape, ctx_scr.dtype)

    x = x_ref[...]                                                  # (c, tn)
    wk = wqkv_ref[hidden:2 * hidden, :]                             # (hidden, c)
    wv = wqkv_ref[2 * hidden:3 * hidden, :]                         # (hidden, c)

    k = lax.dot_general(wk.astype(cdt), x.astype(cdt),
                        dimension_numbers=(((1,), (0,)), ((), ())),
                        preferred_element_type=jnp.float32)         # (hidden, tn)
    v = lax.dot_general(wv.astype(cdt), x.astype(cdt),
                        dimension_numbers=(((1,), (0,)), ((), ())),
                        preferred_element_type=jnp.float32)         # (hidden, tn)

    # k.softmax(dim=-1): online (flash-style) accumulation over the n tiles.
    m_prev = max_scr[...]                                           # (hidden, 1)
    m_new = jnp.maximum(m_prev, jnp.max(k, axis=1, keepdims=True))
    alpha = jnp.exp(m_prev - m_new)                                 # (hidden, 1)
    p = jnp.exp(k - m_new)                                          # (hidden, tn)
    sum_scr[...] = alpha * sum_scr[...] + jnp.sum(p, axis=1, keepdims=True)
    max_scr[...] = m_new

    # ctx_h[d, e] (+=) sum_n p_h[d, n] * v_h[e, n], rescaled per k-row.
    p_c = p.astype(cdt)
    v_c = v.astype(cdt)
    for h in range(heads):
        lo, hi = h * dim_head, (h + 1) * dim_head
        upd = lax.dot_general(p_c[lo:hi, :], v_c[lo:hi, :],
                              dimension_numbers=(((1,), (1,)), ((), ())),
                              preferred_element_type=jnp.float32)   # (d, d)
        ctx_scr[lo:hi, :] = alpha[lo:hi, :] * ctx_scr[lo:hi, :] + upd

    @pl.when(j == n_tiles - 1)
    def _finalize():
        inv_l = pl.reciprocal(sum_scr[...], approx=True)            # (hidden, 1) EUP
        wout_s = wout_ref[...].astype(jnp.float32) * scale          # fold q-scale here
        m_parts = []
        for h in range(heads):
            lo, hi = h * dim_head, (h + 1) * dim_head
            ctx_norm = ctx_scr[lo:hi, :] * inv_l[lo:hi, :]          # (d, e) normalized
            # M_h[c, d] = sum_e wout[c, h*dh + e] * ctx_norm[d, e]
            m_h = lax.dot_general(wout_s[:, lo:hi].astype(cdt), ctx_norm.astype(cdt),
                                  dimension_numbers=(((1,), (1,)), ((), ())),
                                  preferred_element_type=jnp.float32)   # (c, d)
            m_parts.append(m_h)
        m_out_ref[...] = jnp.concatenate(m_parts, axis=1).astype(m_out_ref.dtype)


# ---------------------------------------------------------------------------
# Pass 2 (fully parallel per n-tile): q projection, per-head q-softmax,
# single fused (c,hidden)@(hidden,tn) matmul, bias, RMSNorm.
# ---------------------------------------------------------------------------

def _output_kernel(x_ref, wq_ref, m_ref, b_ref, g_ref, o_ref, q_scr,
                   *, heads, dim_head, eps, mxu_dtype):
    cdt = mxu_dtype
    x = x_ref[...]                                                  # (c, tn)
    q = lax.dot_general(wq_ref[...].astype(cdt), x.astype(cdt),
                        dimension_numbers=(((1,), (0,)), ((), ())),
                        preferred_element_type=jnp.float32)         # (hidden, tn)

    # q.softmax(dim=-2): per-head softmax over the head-channel rows, written
    # into a preallocated VMEM scratch at static sublane offsets (no concat).
    for h in range(heads):
        lo, hi = h * dim_head, (h + 1) * dim_head
        qh = q[lo:hi, :]
        ph = jnp.exp(qh - jnp.max(qh, axis=0, keepdims=True))
        inv = pl.reciprocal(jnp.sum(ph, axis=0, keepdims=True), approx=True)  # EUP
        q_scr[lo:hi, :] = (ph * inv).astype(q_scr.dtype)

    # Fused (out-projection . context): one K=hidden matmul, lane-dense output.
    y = lax.dot_general(m_ref[...].astype(cdt), q_scr[...].astype(cdt),
                        dimension_numbers=(((1,), (0,)), ((), ())),
                        preferred_element_type=jnp.float32)         # (c, tn)
    y = y + b_ref[...].astype(jnp.float32)

    # RMSNorm over channels: F.normalize(y, dim=1, eps) * g * sqrt(c)
    ssq = jnp.sum(y * y, axis=0, keepdims=True)                     # (1, tn)
    inv_norm = lax.rsqrt(jnp.maximum(ssq, eps * eps)) * (y.shape[0] ** 0.5)
    o_ref[...] = (y * inv_norm * g_ref[...].astype(jnp.float32)).astype(o_ref.dtype)


# ---------------------------------------------------------------------------
# Wrapper (pure reshape glue; all compute inside the two Pallas passes)
# ---------------------------------------------------------------------------

def _pick_tile_n(n, max_tile):
    if n <= max_tile:
        return n
    t = (max_tile // 128) * 128
    while t >= 128:
        if n % t == 0:
            return t
        t -= 128
    return n  # fallback: no tiling


def linear_attention_forward(x_nchw, w_qkv, w_out, b_out, g, *,
                             heads, dim_head, mxu_dtype=None, tile_n=2048):
    b, c, h, w = x_nchw.shape
    n = h * w
    hidden = heads * dim_head
    scale = dim_head ** (-0.5)
    dtype = x_nchw.dtype

    assert w_qkv.shape == (3 * hidden, c)
    assert w_out.shape == (c, hidden)
    # Static per-head sublane slices require dim_head aligned to the sublane tile.
    assert dim_head % 8 == 0, "dim_head must be a multiple of 8 (f32 sublane tile)"

    if mxu_dtype is None:
        # bf16 MXU operands (f32 accumulation) by default for f32 models.
        mxu_dtype = jnp.bfloat16 if dtype == jnp.float32 else dtype
    q_scr_dtype = (mxu_dtype
                   if (jnp.dtype(mxu_dtype).itemsize == 4 or dim_head % 16 == 0)
                   else jnp.float32)

    tn = _pick_tile_n(n, tile_n)
    n_tiles = n // tn

    # NCHW -> (b, c, n): pure reshape, no transpose (lane-dense n).
    x_cn = x_nchw.reshape(b, c, n)
    b_out2 = b_out.reshape(c, 1)
    g2 = g.reshape(c, 1)

    # Explicit VMEM budget: above v5e's 16 MiB scoped default, under v7x's 64 MiB.
    vmem_limit = 48 * 1024 * 1024

    # ---- pass 1: per-batch fused context/out-proj matrix M (b, c, hidden) ----
    m_ctx = pl.pallas_call(
        functools.partial(_context_kernel, heads=heads, dim_head=dim_head,
                          scale=scale, mxu_dtype=mxu_dtype),
        out_shape=jax.ShapeDtypeStruct((b, c, hidden), jnp.float32),
        grid=(b, n_tiles),
        in_specs=[
            pl.BlockSpec((None, c, tn), lambda i, j: (i, 0, j)),       # x tile
            pl.BlockSpec((3 * hidden, c), lambda i, j: (0, 0)),        # w_qkv (resident)
            pl.BlockSpec((c, hidden), lambda i, j: (0, 0)),            # w_out (resident)
        ],
        out_specs=pl.BlockSpec((None, c, hidden), lambda i, j: (i, 0, 0)),
        scratch_shapes=[
            pltpu.VMEM((hidden, dim_head), jnp.float32),   # context accumulator
            pltpu.VMEM((hidden, 1), jnp.float32),          # running max of k
            pltpu.VMEM((hidden, 1), jnp.float32),          # running sum of exp(k)
        ],
        compiler_params=pltpu.CompilerParams(
            dimension_semantics=("parallel", "arbitrary"),
            vmem_limit_bytes=vmem_limit),
    )(x_cn, w_qkv, w_out)

    # ---- pass 2: q softmax + single fused matmul + bias + RMSNorm ----
    y_cn = pl.pallas_call(
        functools.partial(_output_kernel, heads=heads, dim_head=dim_head,
                          eps=1e-12, mxu_dtype=mxu_dtype),
        out_shape=jax.ShapeDtypeStruct((b, c, n), dtype),
        grid=(b, n_tiles),
        in_specs=[
            pl.BlockSpec((None, c, tn), lambda i, j: (i, 0, j)),       # x tile
            pl.BlockSpec((hidden, c), lambda i, j: (0, 0)),            # w_q rows of w_qkv
            pl.BlockSpec((None, c, hidden), lambda i, j: (i, 0, 0)),   # M (per batch)
            pl.BlockSpec((c, 1), lambda i, j: (0, 0)),                 # bias
            pl.BlockSpec((c, 1), lambda i, j: (0, 0)),                 # RMSNorm gain
        ],
        out_specs=pl.BlockSpec((None, c, tn), lambda i, j: (i, 0, j)),
        scratch_shapes=[pltpu.VMEM((hidden, tn), q_scr_dtype)],        # softmaxed q
        compiler_params=pltpu.CompilerParams(
            dimension_semantics=("parallel", "parallel"),              # v7x: 2 TCs busy even at b=1
            vmem_limit_bytes=vmem_limit),
    )(x_cn, w_qkv, m_ctx, b_out2, g2)

    # (b, c, n) -> NCHW: pure reshape, no transpose.
    return y_cn.reshape(b, c, h, w)


# ---------------------------------------------------------------------------
# Pure-JAX reference (mirrors the PyTorch LinearAttention forward exactly)
# ---------------------------------------------------------------------------

def linear_attention_reference(x_nchw, w_qkv, w_out, b_out, g, *, heads, dim_head):
    b, c, h, w = x_nchw.shape
    n = h * w
    hidden = heads * dim_head
    scale = dim_head ** (-0.5)

    x = x_nchw.reshape(b, c, n)                                  # (b, c, n)
    qkv = jnp.einsum("oc,bcn->bon", w_qkv, x)                    # (b, 3*hidden, n)
    q, k, v = jnp.split(qkv, 3, axis=1)
    to_bhdn = lambda t: t.reshape(b, heads, dim_head, n)
    q, k, v = map(to_bhdn, (q, k, v))                            # (b, h, d, n)

    q = jax.nn.softmax(q, axis=-2)
    k = jax.nn.softmax(k, axis=-1)
    q = q * scale
    context = jnp.einsum("bhdn,bhen->bhde", k, v)
    out = jnp.einsum("bhde,bhdn->bhen", context, q)              # (b, h, e, n)
    out = out.reshape(b, hidden, n)                              # (b, hidden, n)

    y = jnp.einsum("ch,bhn->bcn", w_out, out) + b_out.reshape(1, c, 1)
    norm = jnp.sqrt(jnp.sum(y * y, axis=1, keepdims=True))
    y = y / jnp.maximum(norm, 1e-12) * g.reshape(1, c, 1) * (c ** 0.5)
    return y.reshape(b, c, h, w)


# ---------------------------------------------------------------------------
# Main
# ---------------------------------------------------------------------------

if __name__ == "__main__":
    key = jax.random.PRNGKey(0)
    b, dim, h, w = 2, 8, 16, 16
    heads, dim_head = 4, 32
    hidden = heads * dim_head

    k1, k2, k3, k4, k5 = jax.random.split(key, 5)
    x = jax.random.normal(k1, (b, dim, h, w), dtype=jnp.float32)
    # to_qkv: Conv2d(dim, 3*hidden, 1, bias=False) weight, squeezed -> (3*hidden, dim)
    w_qkv = jax.random.normal(k2, (3 * hidden, dim), dtype=jnp.float32) * 0.05
    # to_out[0]: Conv2d(hidden, dim, 1) weight -> (dim, hidden), plus bias (dim,)
    w_out = jax.random.normal(k3, (dim, hidden), dtype=jnp.float32) * 0.05
    b_out = jax.random.normal(k4, (dim,), dtype=jnp.float32) * 0.05
    # to_out[1]: RMSNorm gain (dim,)  (init ones in PyTorch; perturb to exercise it)
    g = 1.0 + 0.1 * jax.random.normal(k5, (dim,), dtype=jnp.float32)

    y_ref = linear_attention_reference(x, w_qkv, w_out, b_out, g,
                                       heads=heads, dim_head=dim_head)

    # Exact MXU path (f32 operands); tile_n=128 -> 2 n-tiles, exercising the
    # online (flash-style) tiled k-softmax / context accumulation.
    y_f32 = linear_attention_forward(x, w_qkv, w_out, b_out, g,
                                     heads=heads, dim_head=dim_head,
                                     mxu_dtype=jnp.float32, tile_n=128)
    y_f32 = jax.block_until_ready(y_f32)
    assert y_f32.shape == (b, dim, h, w)
    assert jnp.allclose(y_f32, y_ref, atol=2e-3, rtol=2e-3), "f32-MXU mismatch vs reference"

    # Default fast path: bf16 MXU operands with f32 accumulation.
    y_bf = linear_attention_forward(x, w_qkv, w_out, b_out, g,
                                    heads=heads, dim_head=dim_head)
    y_bf = jax.block_until_ready(y_bf)
    assert jnp.allclose(y_bf, y_ref, atol=3e-2, rtol=3e-2), "bf16-MXU mismatch vs reference"

    print("KERNEL_OK")
</pallas_src>

<mosaic_0001>
module attributes {stable_mosaic.version = 11 : i64} {
  func.func @_context_kernel(%arg0: i32, %arg1: i32, %arg2: memref<1x8x128xf32, #tpu.memory_space<vmem>>, %arg3: memref<384x8xf32, #tpu.memory_space<vmem>>, %arg4: memref<8x128xf32, #tpu.memory_space<vmem>>, %arg5: memref<1x8x128xf32, #tpu.memory_space<vmem>>, %arg6: memref<128x32xf32, #tpu.memory_space<vmem>>, %arg7: memref<128x1xf32, #tpu.memory_space<vmem>>, %arg8: memref<128x1xf32, #tpu.memory_space<vmem>>) attributes {dimension_semantics = [#tpu.dimension_semantics<parallel>, #tpu.dimension_semantics<arbitrary>], iteration_bounds = array<i64: 2, 2>, scalar_prefetch = 0 : i64, scratch_operands = 3 : i64, tpu.core_type = #tpu.core_type<tc>, window_params = [{transform_indices = @transform_0, window_bounds = array<i64: 1, 8, 128>}, {pipeline_mode = #tpu.pipeline_mode<synchronous>, transform_indices = @transform_1, window_bounds = array<i64: 384, 8>}, {pipeline_mode = #tpu.pipeline_mode<synchronous>, transform_indices = @transform_2, window_bounds = array<i64: 8, 128>}, {transform_indices = @transform_3, window_bounds = array<i64: 1, 8, 128>}]} {
    %c0_i32 = arith.constant 0 : i32
    %0 = arith.cmpi eq, %arg1, %c0_i32 : i32
    %1 = arith.extui %0 : i1 to i32
    %c0_i32_0 = arith.constant 0 : i32
    %2 = arith.cmpi ne, %1, %c0_i32_0 : i32
    scf.if %2 {
      %cst_34 = arith.constant 0xFF800000 : f32
      %64 = vector.broadcast %cst_34 : f32 to vector<128x1xf32>
      %c0_35 = arith.constant 0 : index
      %c0_36 = arith.constant 0 : index
      %65 = vector.load %arg7[%c0_35, %c0_36] : memref<128x1xf32, #tpu.memory_space<vmem>>, vector<128x1xf32>
      tpu.vector_store %arg7[%c0_35, %c0_36], %64 {strides = array<i32>} : memref<128x1xf32, #tpu.memory_space<vmem>>, vector<128x1xf32>,
      %cst_37 = arith.constant 0.000000e+00 : f32
      %66 = vector.broadcast %cst_37 : f32 to vector<128x1xf32>
      %c0_38 = arith.constant 0 : index
      %c0_39 = arith.constant 0 : index
      %67 = vector.load %arg8[%c0_38, %c0_39] : memref<128x1xf32, #tpu.memory_space<vmem>>, vector<128x1xf32>
      tpu.vector_store %arg8[%c0_38, %c0_39], %66 {strides = array<i32>} : memref<128x1xf32, #tpu.memory_space<vmem>>, vector<128x1xf32>,
      %cst_40 = arith.constant 0.000000e+00 : f32
      %68 = vector.broadcast %cst_40 : f32 to vector<128x32xf32>
      %c0_41 = arith.constant 0 : index
      %c0_42 = arith.constant 0 : index
      %69 = vector.load %arg6[%c0_41, %c0_42] : memref<128x32xf32, #tpu.memory_space<vmem>>, vector<128x32xf32>
      tpu.vector_store %arg6[%c0_41, %c0_42], %68 {strides = array<i32>} : memref<128x32xf32, #tpu.memory_space<vmem>>, vector<128x32xf32>,
    } else {
    }
    %c0 = arith.constant 0 : index
    %c0_1 = arith.constant 0 : index
    %c0_2 = arith.constant 0 : index
    %3 = vector.load %arg2[%c0, %c0_1, %c0_2] : memref<1x8x128xf32, #tpu.memory_space<vmem>>, vector<1x8x128xf32>
    %4 = vector.shape_cast %3 : vector<1x8x128xf32> to vector<8x128xf32>
    %c128 = arith.constant 128 : index
    %c0_3 = arith.constant 0 : index
    %5 = vector.load %arg3[%c128, %c0_3] : memref<384x8xf32, #tpu.memory_space<vmem>>, vector<128x8xf32>
    %c256 = arith.constant 256 : index
    %c0_4 = arith.constant 0 : index
    %6 = vector.load %arg3[%c256, %c0_4] : memref<384x8xf32, #tpu.memory_space<vmem>>, vector<128x8xf32>
    %cst = arith.constant dense<0.000000e+00> : vector<128x128xf32>
    %7 = tpu.matmul %5, %4, %cst {dimension_numbers = #tpu.dot_dimension_numbers<[1], [0], [0], [1], [0, 0, 1, 1], [], []>} : vector<128x8xf32>, vector<8x128xf32>, vector<128x128xf32> -> vector<128x128xf32>
    %cst_5 = arith.constant dense<0.000000e+00> : vector<128x128xf32>
    %8 = tpu.matmul %6, %4, %cst_5 {dimension_numbers = #tpu.dot_dimension_numbers<[1], [0], [0], [1], [0, 0, 1, 1], [], []>} : vector<128x8xf32>, vector<8x128xf32>, vector<128x128xf32> -> vector<128x128xf32>
    %c0_6 = arith.constant 0 : index
    %c0_7 = arith.constant 0 : index
    %9 = vector.load %arg7[%c0_6, %c0_7] : memref<128x1xf32, #tpu.memory_space<vmem>>, vector<128x1xf32>
    %cst_8 = arith.constant dense<0xFF800000> : vector<128xf32>
    %10 = vector.multi_reduction <maximumf>, %7, %cst_8 [1] : vector<128x128xf32> to vector<128xf32>
    %11 = vector.shape_cast %10 : vector<128xf32> to vector<128x1xf32>
    %12 = arith.maximumf %9, %11 : vector<128x1xf32>
    %13 = arith.subf %9, %12 : vector<128x1xf32>
    %14 = math.exp %13 : vector<128x1xf32>
    %15 = vector.broadcast %12 : vector<128x1xf32> to vector<128x128xf32>
    %16 = arith.subf %7, %15 : vector<128x128xf32>
    %17 = math.exp %16 : vector<128x128xf32>
    %c0_9 = arith.constant 0 : index
    %c0_10 = arith.constant 0 : index
    %18 = vector.load %arg8[%c0_9, %c0_10] : memref<128x1xf32, #tpu.memory_space<vmem>>, vector<128x1xf32>
    %19 = arith.mulf %14, %18 : vector<128x1xf32>
    %cst_11 = arith.constant dense<0.000000e+00> : vector<128xf32>
    %20 = vector.multi_reduction <add>, %17, %cst_11 [1] : vector<128x128xf32> to vector<128xf32>
    %21 = vector.shape_cast %20 : vector<128xf32> to vector<128x1xf32>
    %22 = arith.addf %19, %21 : vector<128x1xf32>
    %c0_12 = arith.constant 0 : index
    %c0_13 = arith.constant 0 : index
    %23 = vector.load %arg8[%c0_12, %c0_13] : memref<128x1xf32, #tpu.memory_space<vmem>>, vector<128x1xf32>
    tpu.vector_store %arg8[%c0_12, %c0_13], %22 {strides = array<i32>} : memref<128x1xf32, #tpu.memory_space<vmem>>, vector<128x1xf32>,
    %c0_14 = arith.constant 0 : index
    %c0_15 = arith.constant 0 : index
    %24 = vector.load %arg7[%c0_14, %c0_15] : memref<128x1xf32, #tpu.memory_space<vmem>>, vector<128x1xf32>
    tpu.vector_store %arg7[%c0_14, %c0_15], %12 {strides = array<i32>} : memref<128x1xf32, #tpu.memory_space<vmem>>, vector<128x1xf32>,
    %25 = vector.extract_strided_slice %17 {offsets = [0, 0], sizes = [32, 128], strides = [1, 1]} : vector<128x128xf32> to vector<32x128xf32>
    %26 = vector.extract_strided_slice %8 {offsets = [0, 0], sizes = [32, 128], strides = [1, 1]} : vector<128x128xf32> to vector<32x128xf32>
    %cst_16 = arith.constant dense<0.000000e+00> : vector<32x32xf32>
    %27 = tpu.matmul %25, %26, %cst_16 {dimension_numbers = #tpu.dot_dimension_numbers<[1], [1], [0], [0], [0, 0, 1, 0], [], []>} : vector<32x128xf32>, vector<32x128xf32>, vector<32x32xf32> -> vector<32x32xf32>
    %28 = vector.extract_strided_slice %14 {offsets = [0, 0], sizes = [32, 1], strides = [1, 1]} : vector<128x1xf32> to vector<32x1xf32>
    %c0_17 = arith.constant 0 : index
    %c0_18 = arith.constant 0 : index
    %29 = vector.load %arg6[%c0_17, %c0_18] : memref<128x32xf32, #tpu.memory_space<vmem>>, vector<32x32xf32>
    %30 = vector.broadcast %28 : vector<32x1xf32> to vector<32x32xf32>
    %31 = arith.mulf %30, %29 : vector<32x32xf32>
    %32 = arith.addf %31, %27 : vector<32x32xf32>
    %c0_19 = arith.constant 0 : index
    %c0_20 = arith.constant 0 : index
    %33 = vector.load %arg6[%c0_19, %c0_20] : memref<128x32xf32, #tpu.memory_space<vmem>>, vector<32x32xf32>
    tpu.vector_store %arg6[%c0_19, %c0_20], %32 {strides = array<i32>} : memref<128x32xf32, #tpu.memory_space<vmem>>, vector<32x32xf32>,
    %34 = vector.extract_strided_slice %17 {offsets = [32, 0], sizes = [32, 128], strides = [1, 1]} : vector<128x128xf32> to vector<32x128xf32>
    %35 = vector.extract_strided_slice %8 {offsets = [32, 0], sizes = [32, 128], strides = [1, 1]} : vector<128x128xf32> to vector<32x128xf32>
    %cst_21 = arith.constant dense<0.000000e+00> : vector<32x32xf32>
    %36 = tpu.matmul %34, %35, %cst_21 {dimension_numbers = #tpu.dot_dimension_numbers<[1], [1], [0], [0], [0, 0, 1, 0], [], []>} : vector<32x128xf32>, vector<32x128xf32>, vector<32x32xf32> -> vector<32x32xf32>
    %37 = vector.extract_strided_slice %14 {offsets = [32, 0], sizes = [32, 1], strides = [1, 1]} : vector<128x1xf32> to vector<32x1xf32>
    %c32 = arith.constant 32 : index
    %c0_22 = arith.constant 0 : index
    %38 = vector.load %arg6[%c32, %c0_22] : memref<128x32xf32, #tpu.memory_space<vmem>>, vector<32x32xf32>
    %39 = vector.broadcast %37 : vector<32x1xf32> to vector<32x32xf32>
    %40 = arith.mulf %39, %38 : vector<32x32xf32>
    %41 = arith.addf %40, %36 : vector<32x32xf32>
    %c32_23 = arith.constant 32 : index
    %c0_24 = arith.constant 0 : index
    %42 = vector.load %arg6[%c32_23, %c0_24] : memref<128x32xf32, #tpu.memory_space<vmem>>, vector<32x32xf32>
    tpu.vector_store %arg6[%c32_23, %c0_24], %41 {strides = array<i32>} : memref<128x32xf32, #tpu.memory_space<vmem>>, vector<32x32xf32>,
    %43 = vector.extract_strided_slice %17 {offsets = [64, 0], sizes = [32, 128], strides = [1, 1]} : vector<128x128xf32> to vector<32x128xf32>
    %44 = vector.extract_strided_slice %8 {offsets = [64, 0], sizes = [32, 128], strides = [1, 1]} : vector<128x128xf32> to vector<32x128xf32>
    %cst_25 = arith.constant dense<0.000000e+00> : vector<32x32xf32>
    %45 = tpu.matmul %43, %44, %cst_25 {dimension_numbers = #tpu.dot_dimension_numbers<[1], [1], [0], [0], [0, 0, 1, 0], [], []>} : vector<32x128xf32>, vector<32x128xf32>, vector<32x32xf32> -> vector<32x32xf32>
    %46 = vector.extract_strided_slice %14 {offsets = [64, 0], sizes = [32, 1], strides = [1, 1]} : vector<128x1xf32> to vector<32x1xf32>
    %c64 = arith.constant 64 : index
    %c0_26 = arith.constant 0 : index
    %47 = vector.load %arg6[%c64, %c0_26] : memref<128x32xf32, #tpu.memory_space<vmem>>, vector<32x32xf32>
    %48 = vector.broadcast %46 : vector<32x1xf32> to vector<32x32xf32>
    %49 = arith.mulf %48, %47 : vector<32x32xf32>
    %50 = arith.addf %49, %45 : vector<32x32xf32>
    %c64_27 = arith.constant 64 : index
    %c0_28 = arith.constant 0 : index
    %51 = vector.load %arg6[%c64_27, %c0_28] : memref<128x32xf32, #tpu.memory_space<vmem>>, vector<32x32xf32>
    tpu.vector_store %arg6[%c64_27, %c0_28], %50 {strides = array<i32>} : memref<128x32xf32, #tpu.memory_space<vmem>>, vector<32x32xf32>,
    %52 = vector.extract_strided_slice %17 {offsets = [96, 0], sizes = [32, 128], strides = [1, 1]} : vector<128x128xf32> to vector<32x128xf32>
    %53 = vector.extract_strided_slice %8 {offsets = [96, 0], sizes = [32, 128], strides = [1, 1]} : vector<128x128xf32> to vector<32x128xf32>
    %cst_29 = arith.constant dense<0.000000e+00> : vector<32x32xf32>
    %54 = tpu.matmul %52, %53, %cst_29 {dimension_numbers = #tpu.dot_dimension_numbers<[1], [1], [0], [0], [0, 0, 1, 0], [], []>} : vector<32x128xf32>, vector<32x128xf32>, vector<32x32xf32> -> vector<32x32xf32>
    %55 = vector.extract_strided_slice %14 {offsets = [96, 0], sizes = [32, 1], strides = [1, 1]} : vector<128x1xf32> to vector<32x1xf32>
    %c96 = arith.constant 96 : index
    %c0_30 = arith.constant 0 : index
    %56 = vector.load %arg6[%c96, %c0_30] : memref<128x32xf32, #tpu.memory_space<vmem>>, vector<32x32xf32>
    %57 = vector.broadcast %55 : vector<32x1xf32> to vector<32x32xf32>
    %58 = arith.mulf %57, %56 : vector<32x32xf32>
    %59 = arith.addf %58, %54 : vector<32x32xf32>
    %c96_31 = arith.constant 96 : index
    %c0_32 = arith.constant 0 : index
    %60 = vector.load %arg6[%c96_31, %c0_32] : memref<128x32xf32, #tpu.memory_space<vmem>>, vector<32x32xf32>
    tpu.vector_store %arg6[%c96_31, %c0_32], %59 {strides = array<i32>} : memref<128x32xf32, #tpu.memory_space<vmem>>, vector<32x32xf32>,
    %c1_i32 = arith.constant 1 : i32
    %61 = arith.cmpi eq, %arg1, %c1_i32 : i32
    %62 = arith.extui %61 : i1 to i32
    %c0_i32_33 = arith.constant 0 : i32
    %63 = arith.cmpi ne, %62, %c0_i32_33 : i32
    scf.if %63 {
      %c0_34 = arith.constant 0 : index
      %c0_35 = arith.constant 0 : index
      %64 = vector.load %arg8[%c0_34, %c0_35] : memref<128x1xf32, #tpu.memory_space<vmem>>, vector<128x1xf32>
      %65 = tpu.reciprocal %64 {approx = true} : vector<128x1xf32> -> vector<128x1xf32>
      %c0_36 = arith.constant 0 : index
      %c0_37 = arith.constant 0 : index
      %66 = vector.load %arg4[%c0_36, %c0_37] : memref<8x128xf32, #tpu.memory_space<vmem>>, vector<8x128xf32>
      %cst_38 = arith.constant 0.176776692 : f32
      %67 = vector.broadcast %cst_38 : f32 to vector<8x128xf32>
      %68 = arith.mulf %66, %67 : vector<8x128xf32>
      %c0_39 = arith.constant 0 : index
      %c0_40 = arith.constant 0 : index
      %69 = vector.load %arg6[%c0_39, %c0_40] : memref<128x32xf32, #tpu.memory_space<vmem>>, vector<32x32xf32>
      %70 = vector.extract_strided_slice %65 {offsets = [0, 0], sizes = [32, 1], strides = [1, 1]} : vector<128x1xf32> to vector<32x1xf32>
      %71 = vector.broadcast %70 : vector<32x1xf32> to vector<32x32xf32>
      %72 = arith.mulf %69, %71 : vector<32x32xf32>
      %73 = vector.extract_strided_slice %68 {offsets = [0, 0], sizes = [8, 32], strides = [1, 1]} : vector<8x128xf32> to vector<8x32xf32>
      %cst_41 = arith.constant dense<0.000000e+00> : vector<8x32xf32>
      %74 = tpu.matmul %73, %72, %cst_41 {dimension_numbers = #tpu.dot_dimension_numbers<[1], [1], [0], [0], [0, 0, 1, 0], [], []>} : vector<8x32xf32>, vector<32x32xf32>, vector<8x32xf32> -> vector<8x32xf32>
      %c32_42 = arith.constant 32 : index
      %c0_43 = arith.constant 0 : index
      %75 = vector.load %arg6[%c32_42, %c0_43] : memref<128x32xf32, #tpu.memory_space<vmem>>, vector<32x32xf32>
      %76 = vector.extract_strided_slice %65 {offsets = [32, 0], sizes = [32, 1], strides = [1, 1]} : vector<128x1xf32> to vector<32x1xf32>
      %77 = vector.broadcast %76 : vector<32x1xf32> to vector<32x32xf32>
      %78 = arith.mulf %75, %77 : vector<32x32xf32>
      %79 = vector.extract_strided_slice %68 {offsets = [0, 32], sizes = [8, 32], strides = [1, 1]} : vector<8x128xf32> to vector<8x32xf32>
      %cst_44 = arith.constant dense<0.000000e+00> : vector<8x32xf32>
      %80 = tpu.matmul %79, %78, %cst_44 {dimension_numbers = #tpu.dot_dimension_numbers<[1], [1], [0], [0], [0, 0, 1, 0], [], []>} : vector<8x32xf32>, vector<32x32xf32>, vector<8x32xf32> -> vector<8x32xf32>
      %c64_45 = arith.constant 64 : index
      %c0_46 = arith.constant 0 : index
      %81 = vector.load %arg6[%c64_45, %c0_46] : memref<128x32xf32, #tpu.memory_space<vmem>>, vector<32x32xf32>
      %82 = vector.extract_strided_slice %65 {offsets = [64, 0], sizes = [32, 1], strides = [1, 1]} : vector<128x1xf32> to vector<32x1xf32>
      %83 = vector.broadcast %82 : vector<32x1xf32> to vector<32x32xf32>
      %84 = arith.mulf %81, %83 : vector<32x32xf32>
      %85 = vector.extract_strided_slice %68 {offsets = [0, 64], sizes = [8, 32], strides = [1, 1]} : vector<8x128xf32> to vector<8x32xf32>
      %cst_47 = arith.constant dense<0.000000e+00> : vector<8x32xf32>
      %86 = tpu.matmul %85, %84, %cst_47 {dimension_numbers = #tpu.dot_dimension_numbers<[1], [1], [0], [0], [0, 0, 1, 0], [], []>} : vector<8x32xf32>, vector<32x32xf32>, vector<8x32xf32> -> vector<8x32xf32>
      %c96_48 = arith.constant 96 : index
      %c0_49 = arith.constant 0 : index
      %87 = vector.load %arg6[%c96_48, %c0_49] : memref<128x32xf32, #tpu.memory_space<vmem>>, vector<32x32xf32>
      %88 = vector.extract_strided_slice %65 {offsets = [96, 0], sizes = [32, 1], strides = [1, 1]} : vector<128x1xf32> to vector<32x1xf32>
      %89 = vector.broadcast %88 : vector<32x1xf32> to vector<32x32xf32>
      %90 = arith.mulf %87, %89 : vector<32x32xf32>
      %91 = vector.extract_strided_slice %68 {offsets = [0, 96], sizes = [8, 32], strides = [1, 1]} : vector<8x128xf32> to vector<8x32xf32>
      %cst_50 = arith.constant dense<0.000000e+00> : vector<8x32xf32>
      %92 = tpu.matmul %91, %90, %cst_50 {dimension_numbers = #tpu.dot_dimension_numbers<[1], [1], [0], [0], [0, 0, 1, 0], [], []>} : vector<8x32xf32>, vector<32x32xf32>, vector<8x32xf32> -> vector<8x32xf32>
      %93 = tpu.concatenate %74, %80, %86, %92 in 1 : vector<8x32xf32>, vector<8x32xf32>, vector<8x32xf32>, vector<8x32xf32> -> vector<8x128xf32>
      %c0_51 = arith.constant 0 : index
      %c0_52 = arith.constant 0 : index
      %c0_53 = arith.constant 0 : index
      %94 = vector.load %arg5[%c0_51, %c0_52, %c0_53] : memref<1x8x128xf32, #tpu.memory_space<vmem>>, vector<1x8x128xf32>
      %95 = vector.shape_cast %94 : vector<1x8x128xf32> to vector<8x128xf32>
      %96 = vector.shape_cast %93 : vector<8x128xf32> to vector<1x8x128xf32>
      tpu.vector_store %arg5[%c0_51, %c0_52, %c0_53], %96 {strides = array<i32>} : memref<1x8x128xf32, #tpu.memory_space<vmem>>, vector<1x8x128xf32>,
    } else {
    }
    return
  }
  func.func @transform_0(%arg0: i32, %arg1: i32) -> (i32, i32, i32) {
    %c0_i32 = arith.constant 0 : i32
    %c0_i32_0 = arith.constant 0 : i32
    return %arg0, %c0_i32, %arg1 : i32, i32, i32
  }
  func.func @transform_1(%arg0: i32, %arg1: i32) -> (i32, i32) {
    %c0_i32 = arith.constant 0 : i32
    %c0_i32_0 = arith.constant 0 : i32
    %c0_i32_1 = arith.constant 0 : i32
    return %c0_i32, %c0_i32_0 : i32, i32
  }
  func.func @transform_2(%arg0: i32, %arg1: i32) -> (i32, i32) {
    %c0_i32 = arith.constant 0 : i32
    %c0_i32_0 = arith.constant 0 : i32
    %c0_i32_1 = arith.constant 0 : i32
    return %c0_i32, %c0_i32_0 : i32, i32
  }
  func.func @transform_3(%arg0: i32, %arg1: i32) -> (i32, i32, i32) {
    %c0_i32 = arith.constant 0 : i32
    %c0_i32_0 = arith.constant 0 : i32
    %c0_i32_1 = arith.constant 0 : i32
    return %arg0, %c0_i32, %c0_i32_0 : i32, i32, i32
  }
}

</mosaic_0001>

<llo_original>
// kernel: tpu_custom_call.1
$region0: #{tpu_custom_call.1}
  #allocation0 [shape = 'u32[]', space=smem, size = 0x4, offset = 0x4, fixed_abs, tag = 'smem constant byte address 0x4 - core index']
  #allocation1 [shape = 'u32[144,128]{1,0:T(1,128)}', space=vmem, size = 0x12000, scoped, tag = 'internal scratch']
  #allocation2 [shape = 'f32[128,32]{1,0:T(8,128)}', space=vmem, size = 0x10000, scoped, tag = 'scratch operand']
  #allocation3 [shape = 'f32[128,1]{1,0:T(8,128)}', space=vmem, size = 0x10000, scoped, tag = 'scratch operand']
  #allocation4 [shape = 'f32[128,1]{1,0:T(8,128)}', space=vmem, size = 0x10000, scoped, tag = 'scratch operand']
  %s0 = inlined_call_operand.vmem [shape: f32[2,8,256], index: 0, kind: input, shape index: {}]
  %s1 = inlined_call_operand.vmem [shape: f32[384,8], index: 1, kind: input, shape index: {}]
  %s2 = inlined_call_operand.vmem [shape: f32[8,128], index: 2, kind: input, shape index: {}]
  %s3 = inlined_call_operand.hbm [shape: f32[2,8,128], index: 3, kind: output, shape index: {}]
  %s4 = sld [smem:[#allocation0]]
  $region53: #{tpu_custom_call.1} parent=0
    _
  %s6 = ssub.s32 1, %s4
  %s7 = scalar_select 0, %s6, %s4
  $region1: #{tpu_custom_call.1} parent=0
    #allocation5 [shape = 'u8[8192]{0}', space=vmem, size = 0x2000, scoped, tag = 'output window, operand 0']
    #allocation6 [shape = 's32[2]{0}', space=sflag, size = 0x8, scoped, tag = 'scoped memory for tpu_custom_call.1']
    %8 = vsyncpa [#allocation6], 0
    %s9 = scalar_lea.sflag [#allocation6], 1
    %10 = vsyncpa %s9, 0
    loop: start=0, step=1, limit=6
    $region2: #{tpu_custom_call.1} parent=1 // loop_pre_header
      _
    $region3: #{tpu_custom_call.1} parent=1 // loop_header
      %s12 = sphi 0, %s16
      %p13 = scmp.ge.s32.totalorder %s12, 6
      %s19 = sphi 0, %s31
      %s20 = sphi 0, %s27
      %s21 = sphi 0, %s19
      %s22 = sphi 0, %s20
      %s23 = sphi 0, %s21
      %s24 = sphi 0, %s22
      %s36 = sphi 0, %s38
      %s39 = sphi 0, %s36
      %s40 = sphi 0, %s39
      %s56 = sphi 0, %s40
      %s60 = sphi 0, %s60
      %s62 = sphi 0, %s60
      %s63 = sphi 0, %s62
      %s77 = sphi 0, %s63
      %s81 = sphi 0, %s81
      %s83 = sphi 0, %s81
      %s84 = sphi 0, %s83
      %s98 = sphi 0, %s84
      %s104 = sphi 0, %s106
      %s107 = sphi 0, %s104
      %s108 = sphi 0, %s107
      %s124 = sphi 0, %s108
    $region4: #{tpu_custom_call.1} parent=1 // loop_header_branch
      %15 = sbr.rel (%p13) target = $region8
    $region5: #{tpu_custom_call.1} parent=1 // loop_body
      %s17 = ssub.s32 %s12, 1
      %s18 = ssub.s32 %s12, 2
      %s25 = sadd.s32 1, %s20
      %p26 = scmp.ge.s32.totalorder %s25, 2
      %s27 = scalar_select %p26, 0, %s25
      %s28 = sadd.s32 1, %s19
      %s29 = scalar_select %p26, %s28, %s19
      %p30 = scmp.ge.s32.totalorder %s29, 2
      %s31 = scalar_select %p30, 0, %s29
      %s32 = ssub.s32 %s19, %s31
      %s33 = ssub.s32 %s20, %s27
      %s34 = sor.u32 %s32, %s33
      %p35 = scmp.eq.s32.totalorder %s34, 0
      %s37 = sadd.s32 %s36, 1
      %s38 = scalar_select %p35, %s36, %s37
      %p41 = pneg %p35
      %p42 = scmp.eq.s32.totalorder %s12, 3
      %p43 = por %p41, %p42
      %p44 = scmp.ne.s32.totalorder %s36, %s39
      %p45 = scmp.eq.s32.totalorder %s12, 0
      %p46 = por %p44, %p45
      %p47 = scmp.ne.s32.totalorder %s36, %s39
      %p48 = scmp.eq.s32.totalorder %s17, 3
      %p49 = por %p47, %p48
      %p50 = scmp.ne.s32.totalorder %s39, %s40
      %p51 = scmp.eq.s32.totalorder %s17, 0
      %p52 = por %p50, %p51
      %p53 = scmp.ne.s32.totalorder %s39, %s40
      %p54 = scmp.eq.s32.totalorder %s18, 3
      %p55 = por %p53, %p54
      %p57 = scmp.ne.s32.totalorder %s40, %s56
      %p58 = scmp.eq.s32.totalorder %s18, 0
      %p59 = por %p57, %p58
      %s61 = sadd.s32 %s60, 1
      %p64 = scmp.eq.s32.totalorder %s12, 3
      %p65 = scmp.ne.s32.totalorder %s60, %s62
      %p66 = scmp.eq.s32.totalorder %s12, 0
      %p67 = por %p65, %p66
      %p68 = scmp.ne.s32.totalorder %s60, %s62
      %p69 = scmp.eq.s32.totalorder %s17, 3
      %p70 = por %p68, %p69
      %p71 = scmp.ne.s32.totalorder %s62, %s63
      %p72 = scmp.eq.s32.totalorder %s17, 0
      %p73 = por %p71, %p72
      %p74 = scmp.ne.s32.totalorder %s62, %s63
      %p75 = scmp.eq.s32.totalorder %s18, 3
      %p76 = por %p74, %p75
      %p78 = scmp.ne.s32.totalorder %s63, %s77
      %p79 = scmp.eq.s32.totalorder %s18, 0
      %p80 = por %p78, %p79
      %s82 = sadd.s32 %s81, 1
      %p85 = scmp.eq.s32.totalorder %s12, 3
      %p86 = scmp.ne.s32.totalorder %s81, %s83
      %p87 = scmp.eq.s32.totalorder %s12, 0
      %p88 = por %p86, %p87
      %p89 = scmp.ne.s32.totalorder %s81, %s83
      %p90 = scmp.eq.s32.totalorder %s17, 3
      %p91 = por %p89, %p90
      %p92 = scmp.ne.s32.totalorder %s83, %s84
      %p93 = scmp.eq.s32.totalorder %s17, 0
      %p94 = por %p92, %p93
      %p95 = scmp.ne.s32.totalorder %s83, %s84
      %p96 = scmp.eq.s32.totalorder %s18, 3
      %p97 = por %p95, %p96
      %p99 = scmp.ne.s32.totalorder %s84, %s98
      %p100 = scmp.eq.s32.totalorder %s18, 0
      %p101 = por %p99, %p100
      %s102 = ssub.s32 %s19, %s31
      %p103 = scmp.eq.s32.totalorder %s102, 0
      %s105 = sadd.s32 %s104, 1
      %s106 = scalar_select %p103, %s104, %s105
      %p109 = pneg %p103
      %p110 = scmp.eq.s32.totalorder %s12, 3
      %p111 = por %p109, %p110
      %p112 = scmp.ne.s32.totalorder %s104, %s107
      %p113 = scmp.eq.s32.totalorder %s12, 0
      %p114 = por %p112, %p113
      %p115 = scmp.ne.s32.totalorder %s104, %s107
      %p116 = scmp.eq.s32.totalorder %s17, 3
      %p117 = por %p115, %p116
      %p118 = scmp.ne.s32.totalorder %s107, %s108
      %p119 = scmp.eq.s32.totalorder %s17, 0
      %p120 = por %p118, %p119
      %p121 = scmp.ne.s32.totalorder %s107, %s108
      %p122 = scmp.eq.s32.totalorder %s18, 3
      %p123 = por %p121, %p122
      %p125 = scmp.ne.s32.totalorder %s108, %s124
      %p126 = scmp.eq.s32.totalorder %s18, 0
      %p127 = por %p125, %p126
      %p128 = scmp.le.s32.totalorder 1, %s12
      %p129 = scmp.lt.s32.totalorder %s12, 5
      %p130 = pnand %p128, %p129
      %p131 = pneg %p130
      // Predicated region
      $region9: #{tpu_custom_call.1} parent=5 // pred_check
        _
      $region10: #{tpu_custom_call.1} parent=5 // pred_check_branch
        %133 = sbr.rel (%p130) target = $region12
      $region11: #{tpu_custom_call.1} parent=5 // pred_region
        %s134 = ssub.s32 %s12, 1
        // Predicated region
        $region13: #{tpu_custom_call.1} parent=11 // pred_check
          %p135 = pneg %p73
        $region14: #{tpu_custom_call.1} parent=11 // pred_check_branch
          %137 = sbr.rel (%p135) target = $region16
        $region15: #{tpu_custom_call.1} parent=11 // pred_region
          _
        $region16: #{tpu_custom_call.1} parent=11 // pred_fallthru
          _
        // Predicated region
        $region17: #{tpu_custom_call.1} parent=11 // pred_check
          %p138 = pneg %p94
        $region18: #{tpu_custom_call.1} parent=11 // pred_check_branch
          %140 = sbr.rel (%p138) target = $region20
        $region19: #{tpu_custom_call.1} parent=11 // pred_region
          _
        $region20: #{tpu_custom_call.1} parent=11 // pred_fallthru
          _
      $region12: #{tpu_custom_call.1} parent=5 // pred_fallthru
        _
      %p141 = scmp.lt.s32.totalorder %s12, 4
      // Predicated region
      $region21: #{tpu_custom_call.1} parent=5 // pred_check
        %p142 = pneg %p141
      $region22: #{tpu_custom_call.1} parent=5 // pred_check_branch
        %144 = sbr.rel (%p142) target = $region24
      $region23: #{tpu_custom_call.1} parent=5 // pred_region
        // Predicated region
        $region25: #{tpu_custom_call.1} parent=23 // pred_check
          %p145 = pneg %p46
        $region26: #{tpu_custom_call.1} parent=23 // pred_check_branch
          %147 = sbr.rel (%p145) target = $region28
        $region27: #{tpu_custom_call.1} parent=23 // pred_region
          %p148 = scmp.lt.s32.totalorder %s19, 1
          %s149 = scalar_select %p148, %s19, 1
          %p150 = scmp.lt.s32.totalorder %s20, 1
          %s151 = scalar_select %p150, %s20, 1
          %s152 = smul.addr %s149, 2
          %s153 = sadd.s32 %s151, %s152
          %s154 = smul.addr %s153, 8
          %s155 = scalar_lea.vmem %s0, %s154
        $region28: #{tpu_custom_call.1} parent=23 // pred_fallthru
          _
      $region24: #{tpu_custom_call.1} parent=5 // pred_fallthru
        _
      %p156 = scmp.le.s32.totalorder 1, %s12
      %p157 = scmp.lt.s32.totalorder %s12, 5
      %p158 = pnand %p156, %p157
      %p159 = pneg %p158
      // Predicated region
      $region29: #{tpu_custom_call.1} parent=5 // pred_check
        _
      $region30: #{tpu_custom_call.1} parent=5 // pred_check_branch
        %161 = sbr.rel (%p158) target = $region32
      $region31: #{tpu_custom_call.1} parent=5 // pred_region
        %s162 = ssub.s32 %s12, 1
        %p163 = scmp.lt.s32.totalorder %s21, 1
        %s164 = scalar_select %p163, %s21, 1
        %p165 = scmp.lt.s32.totalorder %s22, 1
        %s166 = scalar_select %p165, %s22, 1
        %s167 = smul.addr %s164, 2
        %s168 = sadd.s32 %s166, %s167
        %s169 = smul.addr %s168, 8
        %s170 = scalar_lea.vmem %s0, %s169
        %p171 = pneg %p52
        %p172 = pneg %p49
        %p173 = pneg %p73
        %p174 = pneg %p70
        %p175 = pneg %p94
        %p176 = pneg %p91
        %p177 = pneg %p120
        %p178 = pneg %p117
        %s179 = sand.u32 %s107, 1
        %s180 = scalar_lea.sflag [#allocation6], %s179
        %s181 = sand.u32 %s107, 1
        %s182 = smul.addr %s181, 8
        %s183 = scalar_lea.vmem [#allocation5], %s182
        %p184 = scmp.lt.s32.totalorder %s21, 1
        %s185 = scalar_select %p184, %s21, 1
        %p186 = scmp.lt.s32.totalorder %s22, 1
        %s187 = scalar_select %p186, %s22, 1
        %s188 = smul.addr %s185, 2
        %s189 = sadd.s32 %s187, %s188
        %s190 = smul.addr %s189, 8
        %s191 = scalar_lea.vmem %s0, %s190
        %p192 = scmp.eq.s32.totalorder %s22, 0
        // Predicated region
        $region33: #{tpu_custom_call.1} parent=31 // pred_check
          %p193 = pneg %p192
        $region34: #{tpu_custom_call.1} parent=31 // pred_check_branch
          %195 = sbr.rel (%p193) target = $region36
        $region35: #{tpu_custom_call.1} parent=31 // pred_region
          %vm196 = vcmask 7168
          %197 = vst.msk [vmem:[#allocation3] sm:$0xff] %vm196, -inf
          %198 = vst.msk [vmem:[#allocation3 + $0x8] sm:$0xff] %vm196, -inf
          %199 = vst.msk [vmem:[#allocation3 + $0x10] sm:$0xff] %vm196, -inf
          %200 = vst.msk [vmem:[#allocation3 + $0x18] sm:$0xff] %vm196, -inf
          %201 = vst.msk [vmem:[#allocation3 + $0x20] sm:$0xff] %vm196, -inf
          %202 = vst.msk [vmem:[#allocation3 + $0x28] sm:$0xff] %vm196, -inf
          %203 = vst.msk [vmem:[#allocation3 + $0x30] sm:$0xff] %vm196, -inf
          %204 = vst.msk [vmem:[#allocation3 + $0x38] sm:$0xff] %vm196, -inf
          %205 = vst.msk [vmem:[#allocation3 + $0x40] sm:$0xff] %vm196, -inf
          %206 = vst.msk [vmem:[#allocation3 + $0x48] sm:$0xff] %vm196, -inf
          %207 = vst.msk [vmem:[#allocation3 + $0x50] sm:$0xff] %vm196, -inf
          %208 = vst.msk [vmem:[#allocation3 + $0x58] sm:$0xff] %vm196, -inf
          %209 = vst.msk [vmem:[#allocation3 + $0x60] sm:$0xff] %vm196, -inf
          %210 = vst.msk [vmem:[#allocation3 + $0x68] sm:$0xff] %vm196, -inf
          %211 = vst.msk [vmem:[#allocation3 + $0x70] sm:$0xff] %vm196, -inf
          %212 = vst.msk [vmem:[#allocation3 + $0x78] sm:$0xff] %vm196, -inf
          %213 = vst.msk [vmem:[#allocation4] sm:$0xff] %vm196, 0.0
          %214 = vst.msk [vmem:[#allocation4 + $0x8] sm:$0xff] %vm196, 0.0
          %215 = vst.msk [vmem:[#allocation4 + $0x10] sm:$0xff] %vm196, 0.0
          %216 = vst.msk [vmem:[#allocation4 + $0x18] sm:$0xff] %vm196, 0.0
          %217 = vst.msk [vmem:[#allocation4 + $0x20] sm:$0xff] %vm196, 0.0
          %218 = vst.msk [vmem:[#allocation4 + $0x28] sm:$0xff] %vm196, 0.0
          %219 = vst.msk [vmem:[#allocation4 + $0x30] sm:$0xff] %vm196, 0.0
          %220 = vst.msk [vmem:[#allocation4 + $0x38] sm:$0xff] %vm196, 0.0
          %221 = vst.msk [vmem:[#allocation4 + $0x40] sm:$0xff] %vm196, 0.0
          %222 = vst.msk [vmem:[#allocation4 + $0x48] sm:$0xff] %vm196, 0.0
          %223 = vst.msk [vmem:[#allocation4 + $0x50] sm:$0xff] %vm196, 0.0
          %224 = vst.msk [vmem:[#allocation4 + $0x58] sm:$0xff] %vm196, 0.0
          %225 = vst.msk [vmem:[#allocation4 + $0x60] sm:$0xff] %vm196, 0.0
          %226 = vst.msk [vmem:[#allocation4 + $0x68] sm:$0xff] %vm196, 0.0
          %227 = vst.msk [vmem:[#allocation4 + $0x70] sm:$0xff] %vm196, 0.0
          %228 = vst.msk [vmem:[#allocation4 + $0x78] sm:$0xff] %vm196, 0.0
          %vm229 = vcmask 261120
          %230 = vst.msk [vmem:[#allocation2] sm:$0xff] %vm229, 0.0
          %231 = vst.msk [vmem:[#allocation2 + $0x8] sm:$0xff] %vm229, 0.0
          %232 = vst.msk [vmem:[#allocation2 + $0x10] sm:$0xff] %vm229, 0.0
          %233 = vst.msk [vmem:[#allocation2 + $0x18] sm:$0xff] %vm229, 0.0
          %234 = vst.msk [vmem:[#allocation2 + $0x20] sm:$0xff] %vm229, 0.0
          %235 = vst.msk [vmem:[#allocation2 + $0x28] sm:$0xff] %vm229, 0.0
          %236 = vst.msk [vmem:[#allocation2 + $0x30] sm:$0xff] %vm229, 0.0
          %237 = vst.msk [vmem:[#allocation2 + $0x38] sm:$0xff] %vm229, 0.0
          %238 = vst.msk [vmem:[#allocation2 + $0x40] sm:$0xff] %vm229, 0.0
          %239 = vst.msk [vmem:[#allocation2 + $0x48] sm:$0xff] %vm229, 0.0
          %240 = vst.msk [vmem:[#allocation2 + $0x50] sm:$0xff] %vm229, 0.0
          %241 = vst.msk [vmem:[#allocation2 + $0x58] sm:$0xff] %vm229, 0.0
          %242 = vst.msk [vmem:[#allocation2 + $0x60] sm:$0xff] %vm229, 0.0
          %243 = vst.msk [vmem:[#allocation2 + $0x68] sm:$0xff] %vm229, 0.0
          %244 = vst.msk [vmem:[#allocation2 + $0x70] sm:$0xff] %vm229, 0.0
          %245 = vst.msk [vmem:[#allocation2 + $0x78] sm:$0xff] %vm229, 0.0
        $region36: #{tpu_custom_call.1} parent=31 // pred_fallthru
          _
        %v246 = vld [vmem:[%s191] sm:$0xff]
        %v247 = vld [vmem:[%s1 + $0x80] sm:$0xff]
        %v248 = vld [vmem:[%s1 + $0x88] sm:$0xff]
        %v249 = vld [vmem:[%s1 + $0x90] sm:$0xff]
        %v250 = vld [vmem:[%s1 + $0x98] sm:$0xff]
        %v251 = vld [vmem:[%s1 + $0xa0] sm:$0xff]
        %v252 = vld [vmem:[%s1 + $0xa8] sm:$0xff]
        %v253 = vld [vmem:[%s1 + $0xb0] sm:$0xff]
        %v254 = vld [vmem:[%s1 + $0xb8] sm:$0xff]
        %v255 = vld [vmem:[%s1 + $0xc0] sm:$0xff]
        %v256 = vld [vmem:[%s1 + $0xc8] sm:$0xff]
        %v257 = vld [vmem:[%s1 + $0xd0] sm:$0xff]
        %v258 = vld [vmem:[%s1 + $0xd8] sm:$0xff]
        %v259 = vld [vmem:[%s1 + $0xe0] sm:$0xff]
        %v260 = vld [vmem:[%s1 + $0xe8] sm:$0xff]
        %v261 = vld [vmem:[%s1 + $0xf0] sm:$0xff]
        %v262 = vld [vmem:[%s1 + $0xf8] sm:$0xff]
        %v263 = vld [vmem:[%s1 + $0x100] sm:$0xff]
        %v264 = vld [vmem:[%s1 + $0x108] sm:$0xff]
        %v265 = vld [vmem:[%s1 + $0x110] sm:$0xff]
        %v266 = vld [vmem:[%s1 + $0x118] sm:$0xff]
        %v267 = vld [vmem:[%s1 + $0x120] sm:$0xff]
        %v268 = vld [vmem:[%s1 + $0x128] sm:$0xff]
        %v269 = vld [vmem:[%s1 + $0x130] sm:$0xff]
        %v270 = vld [vmem:[%s1 + $0x138] sm:$0xff]
        %v271 = vld [vmem:[%s1 + $0x140] sm:$0xff]
        %v272 = vld [vmem:[%s1 + $0x148] sm:$0xff]
        %v273 = vld [vmem:[%s1 + $0x150] sm:$0xff]
        %v274 = vld [vmem:[%s1 + $0x158] sm:$0xff]
        %v275 = vld [vmem:[%s1 + $0x160] sm:$0xff]
        %v276 = vld [vmem:[%s1 + $0x168] sm:$0xff]
        %v277 = vld [vmem:[%s1 + $0x170] sm:$0xff]
        %v278 = vld [vmem:[%s1 + $0x178] sm:$0xff]
        %vm279 = vcmask 64512
        %v281 = vsel %vm279, %v247, 0
        %v284 = vsel %vm279, %v248, 0
        %v287 = vsel %vm279, %v249, 0
        %v290 = vsel %vm279, %v250, 0
        %v293 = vsel %vm279, %v251, 0
        %v296 = vsel %vm279, %v252, 0
        %v299 = vsel %vm279, %v253, 0
        %v302 = vsel %vm279, %v254, 0
        %v305 = vsel %vm279, %v255, 0
        %v308 = vsel %vm279, %v256, 0
        %v311 = vsel %vm279, %v257, 0
        %v314 = vsel %vm279, %v258, 0
        %v317 = vsel %vm279, %v259, 0
        %v320 = vsel %vm279, %v260, 0
        %v323 = vsel %vm279, %v261, 0
        %v326 = vsel %vm279, %v262, 0
        %328 = vmatprep.subr.mxu0 0.0
        %329 = vmatpush1.msra.mxu0 0.0
        %330 = vmatprep.subr.mxu0 0.0
        %331 = vmatpush1.msra.mxu0 0.0
        %332 = vmatprep.subr.mxu0 0.0
        %333 = vmatpush1.msra.mxu0 0.0
        %334 = vmatprep.subr.mxu0 0.0
        %335 = vmatpush1.msra.mxu0 0.0
        %336 = vmatprep.subr.mxu0 0.0
        %337 = vmatpush1.msra.mxu0 0.0
        %338 = vmatprep.subr.mxu0 0.0
        %339 = vmatpush1.msra.mxu0 0.0
        %340 = vmatprep.subr.mxu0 0.0
        %341 = vmatpush1.msra.mxu0 0.0
        %342 = vmatprep.subr.mxu0 0.0
        %343 = vmatpush1.msra.mxu0 0.0
        %344 = vmatprep.subr.mxu0 0.0
        %345 = vmatpush1.msra.mxu0 0.0
        %346 = vmatprep.subr.mxu0 0.0
        %347 = vmatpush1.msra.mxu0 0.0
        %348 = vmatprep.subr.mxu0 0.0
        %349 = vmatpush1.msra.mxu0 0.0
        %350 = vmatprep.subr.mxu0 0.0
        %351 = vmatpush1.msra.mxu0 0.0
        %352 = vmatprep.subr.mxu0 0.0
        %353 = vmatpush1.msra.mxu0 0.0
        %354 = vmatprep.subr.mxu0 0.0
        %355 = vmatpush1.msra.mxu0 0.0
        %356 = vmatprep.subr.mxu0 0.0
        %357 = vmatpush1.msra.mxu0 0.0
        %358 = vmatprep.subr.mxu0 0.0
        %359 = vmatpush1.msra.mxu0 %v246
        %360 = vmatprep.subr.mxu0 0.0
        %361 = vmatpush2.msra.mxu0 0.0
        %362 = vmatprep.subr.mxu0 0.0
        %363 = vmatpush2.msra.mxu0 0.0
        %364 = vmatprep.subr.mxu0 0.0
        %365 = vmatpush2.msra.mxu0 0.0
        %366 = vmatprep.subr.mxu0 0.0
        %367 = vmatpush2.msra.mxu0 0.0
        %368 = vmatprep.subr.mxu0 0.0
        %369 = vmatpush2.msra.mxu0 0.0
        %370 = vmatprep.subr.mxu0 0.0
        %371 = vmatpush2.msra.mxu0 0.0
        %372 = vmatprep.subr.mxu0 0.0
        %373 = vmatpush2.msra.mxu0 0.0
        %374 = vmatprep.subr.mxu0 0.0
        %375 = vmatpush2.msra.mxu0 0.0
        %376 = vmatprep.subr.mxu0 0.0
        %377 = vmatpush2.msra.mxu0 0.0
        %378 = vmatprep.subr.mxu0 0.0
        %379 = vmatpush2.msra.mxu0 0.0
        %380 = vmatprep.subr.mxu0 0.0
        %381 = vmatpush2.msra.mxu0 0.0
        %382 = vmatprep.subr.mxu0 0.0
        %383 = vmatpush2.msra.mxu0 0.0
        %384 = vmatprep.subr.mxu0 0.0
        %385 = vmatpush2.msra.mxu0 0.0
        %386 = vmatprep.subr.mxu0 0.0
        %387 = vmatpush2.msra.mxu0 0.0
        %388 = vmatprep.subr.mxu0 0.0
        %389 = vmatpush2.msra.mxu0 0.0
        %390 = vmatprep.subr.mxu0 0.0
        %391 = vmatpush2.msra.mxu0 0.0
        %392 = vmatprep.mubr.f32.mxu0 0.0
        %393 = vmatmul.mubr.f32.gmra.mxu0 %v281
        %v394 = vpop.f32.mrf.mxu0
        %v395 = vadd.f32 0.0, %v394
        %v396 = vpop.f32.mrf.mxu0
        %397 = vmatprep.mubr.f32.mxu0 0.0
        %398 = vmatmul.mubr.f32.gmra.mxu0 %v284
        %v399 = vpop.f32.mrf.mxu0
        %v400 = vadd.f32 0.0, %v399
        %v401 = vpop.f32.mrf.mxu0
        %402 = vmatprep.mubr.f32.mxu0 0.0
        %403 = vmatmul.mubr.f32.gmra.mxu0 %v287
        %v404 = vpop.f32.mrf.mxu0
        %v405 = vadd.f32 0.0, %v404
        %v406 = vpop.f32.mrf.mxu0
        %407 = vmatprep.mubr.f32.mxu0 0.0
        %408 = vmatmul.mubr.f32.gmra.mxu0 %v290
        %v409 = vpop.f32.mrf.mxu0
        %v410 = vadd.f32 0.0, %v409
        %v411 = vpop.f32.mrf.mxu0
        %412 = vmatprep.mubr.f32.mxu0 0.0
        %413 = vmatmul.mubr.f32.gmra.mxu0 %v293
        %v414 = vpop.f32.mrf.mxu0
        %v415 = vadd.f32 0.0, %v414
        %v416 = vpop.f32.mrf.mxu0
        %417 = vmatprep.mubr.f32.mxu0 0.0
        %418 = vmatmul.mubr.f32.gmra.mxu0 %v296
        %v419 = vpop.f32.mrf.mxu0
        %v420 = vadd.f32 0.0, %v419
        %v421 = vpop.f32.mrf.mxu0
        %422 = vmatprep.mubr.f32.mxu0 0.0
        %423 = vmatmul.mubr.f32.gmra.mxu0 %v299
        %v424 = vpop.f32.mrf.mxu0
        %v425 = vadd.f32 0.0, %v424
        %v426 = vpop.f32.mrf.mxu0
        %427 = vmatprep.mubr.f32.mxu0 0.0
        %428 = vmatmul.mubr.f32.gmra.mxu0 %v302
        %v429 = vpop.f32.mrf.mxu0
        %v430 = vadd.f32 0.0, %v429
        %v431 = vpop.f32.mrf.mxu0
        %432 = vmatprep.mubr.f32.mxu0 0.0
        %433 = vmatmul.mubr.f32.gmra.mxu0 %v305
        %v434 = vpop.f32.mrf.mxu0
        %v435 = vadd.f32 0.0, %v434
        %v436 = vpop.f32.mrf.mxu0
        %437 = vmatprep.mubr.f32.mxu0 0.0
        %438 = vmatmul.mubr.f32.gmra.mxu0 %v308
        %v439 = vpop.f32.mrf.mxu0
        %v440 = vadd.f32 0.0, %v439
        %v441 = vpop.f32.mrf.mxu0
        %442 = vmatprep.mubr.f32.mxu0 0.0
        %443 = vmatmul.mubr.f32.gmra.mxu0 %v311
        %v444 = vpop.f32.mrf.mxu0
        %v445 = vadd.f32 0.0, %v444
        %v446 = vpop.f32.mrf.mxu0
        %447 = vmatprep.mubr.f32.mxu0 0.0
        %448 = vmatmul.mubr.f32.gmra.mxu0 %v314
        %v449 = vpop.f32.mrf.mxu0
        %v450 = vadd.f32 0.0, %v449
        %v451 = vpop.f32.mrf.mxu0
        %452 = vmatprep.mubr.f32.mxu0 0.0
        %453 = vmatmul.mubr.f32.gmra.mxu0 %v317
        %v454 = vpop.f32.mrf.mxu0
        %v455 = vadd.f32 0.0, %v454
        %v456 = vpop.f32.mrf.mxu0
        %457 = vmatprep.mubr.f32.mxu0 0.0
        %458 = vmatmul.mubr.f32.gmra.mxu0 %v320
        %v459 = vpop.f32.mrf.mxu0
        %v460 = vadd.f32 0.0, %v459
        %v461 = vpop.f32.mrf.mxu0
        %462 = vmatprep.mubr.f32.mxu0 0.0
        %463 = vmatmul.mubr.f32.gmra.mxu0 %v323
        %v464 = vpop.f32.mrf.mxu0
        %v465 = vadd.f32 0.0, %v464
        %v466 = vpop.f32.mrf.mxu0
        %467 = vmatprep.mubr.f32.mxu0 0.0
        %468 = vmatmul.mubr.f32.gmra.mxu0 %v326
        %v469 = vpop.f32.mrf.mxu0
        %v470 = vadd.f32 0.0, %v469
        %v471 = vpop.f32.mrf.mxu0
        %472 = vdwg.mxu0
        %v474 = vsel %vm279, %v263, 0
        %v477 = vsel %vm279, %v264, 0
        %v480 = vsel %vm279, %v265, 0
        %v483 = vsel %vm279, %v266, 0
        %v486 = vsel %vm279, %v267, 0
        %v489 = vsel %vm279, %v268, 0
        %v492 = vsel %vm279, %v269, 0
        %v495 = vsel %vm279, %v270, 0
        %v498 = vsel %vm279, %v271, 0
        %v501 = vsel %vm279, %v272, 0
        %v504 = vsel %vm279, %v273, 0
        %v507 = vsel %vm279, %v274, 0
        %v510 = vsel %vm279, %v275, 0
        %v513 = vsel %vm279, %v276, 0
        %v516 = vsel %vm279, %v277, 0
        %v519 = vsel %vm279, %v278, 0
        %521 = vmatprep.subr.mxu0 0.0
        %522 = vmatpush1.msra.mxu0 0.0
        %523 = vmatprep.subr.mxu0 0.0
        %524 = vmatpush1.msra.mxu0 0.0
        %525 = vmatprep.subr.mxu0 0.0
        %526 = vmatpush1.msra.mxu0 0.0
        %527 = vmatprep.subr.mxu0 0.0
        %528 = vmatpush1.msra.mxu0 0.0
        %529 = vmatprep.subr.mxu0 0.0
        %530 = vmatpush1.msra.mxu0 0.0
        %531 = vmatprep.subr.mxu0 0.0
        %532 = vmatpush1.msra.mxu0 0.0
        %533 = vmatprep.subr.mxu0 0.0
        %534 = vmatpush1.msra.mxu0 0.0
        %535 = vmatprep.subr.mxu0 0.0
        %536 = vmatpush1.msra.mxu0 0.0
        %537 = vmatprep.subr.mxu0 0.0
        %538 = vmatpush1.msra.mxu0 0.0
        %539 = vmatprep.subr.mxu0 0.0
        %540 = vmatpush1.msra.mxu0 0.0
        %541 = vmatprep.subr.mxu0 0.0
        %542 = vmatpush1.msra.mxu0 0.0
        %543 = vmatprep.subr.mxu0 0.0
        %544 = vmatpush1.msra.mxu0 0.0
        %545 = vmatprep.subr.mxu0 0.0
        %546 = vmatpush1.msra.mxu0 0.0
        %547 = vmatprep.subr.mxu0 0.0
        %548 = vmatpush1.msra.mxu0 0.0
        %549 = vmatprep.subr.mxu0 0.0
        %550 = vmatpush1.msra.mxu0 0.0
        %551 = vmatprep.subr.mxu0 0.0
        %552 = vmatpush1.msra.mxu0 %v246
        %553 = vmatprep.subr.mxu0 0.0
        %554 = vmatpush2.msra.mxu0 0.0
        %555 = vmatprep.subr.mxu0 0.0
        %556 = vmatpush2.msra.mxu0 0.0
        %557 = vmatprep.subr.mxu0 0.0
        %558 = vmatpush2.msra.mxu0 0.0
        %559 = vmatprep.subr.mxu0 0.0
        %560 = vmatpush2.msra.mxu0 0.0
        %561 = vmatprep.subr.mxu0 0.0
        %562 = vmatpush2.msra.mxu0 0.0
        %563 = vmatprep.subr.mxu0 0.0
        %564 = vmatpush2.msra.mxu0 0.0
        %565 = vmatprep.subr.mxu0 0.0
        %566 = vmatpush2.msra.mxu0 0.0
        %567 = vmatprep.subr.mxu0 0.0
        %568 = vmatpush2.msra.mxu0 0.0
        %569 = vmatprep.subr.mxu0 0.0
        %570 = vmatpush2.msra.mxu0 0.0
        %571 = vmatprep.subr.mxu0 0.0
        %572 = vmatpush2.msra.mxu0 0.0
        %573 = vmatprep.subr.mxu0 0.0
        %574 = vmatpush2.msra.mxu0 0.0
        %575 = vmatprep.subr.mxu0 0.0
        %576 = vmatpush2.msra.mxu0 0.0
        %577 = vmatprep.subr.mxu0 0.0
        %578 = vmatpush2.msra.mxu0 0.0
        %579 = vmatprep.subr.mxu0 0.0
        %580 = vmatpush2.msra.mxu0 0.0
        %581 = vmatprep.subr.mxu0 0.0
        %582 = vmatpush2.msra.mxu0 0.0
        %583 = vmatprep.subr.mxu0 0.0
        %584 = vmatpush2.msra.mxu0 0.0
        %585 = vmatprep.mubr.f32.mxu0 0.0
        %586 = vmatmul.mubr.f32.gmra.mxu0 %v474
        %v587 = vpop.f32.mrf.mxu0
        %v588 = vadd.f32 0.0, %v587
        %v589 = vpop.f32.mrf.mxu0
        %590 = vmatprep.mubr.f32.mxu0 0.0
        %591 = vmatmul.mubr.f32.gmra.mxu0 %v477
        %v592 = vpop.f32.mrf.mxu0
        %v593 = vadd.f32 0.0, %v592
        %v594 = vpop.f32.mrf.mxu0
        %595 = vmatprep.mubr.f32.mxu0 0.0
        %596 = vmatmul.mubr.f32.gmra.mxu0 %v480
        %v597 = vpop.f32.mrf.mxu0
        %v598 = vadd.f32 0.0, %v597
        %v599 = vpop.f32.mrf.mxu0
        %600 = vmatprep.mubr.f32.mxu0 0.0
        %601 = vmatmul.mubr.f32.gmra.mxu0 %v483
        %v602 = vpop.f32.mrf.mxu0
        %v603 = vadd.f32 0.0, %v602
        %v604 = vpop.f32.mrf.mxu0
        %605 = vmatprep.mubr.f32.mxu0 0.0
        %606 = vmatmul.mubr.f32.gmra.mxu0 %v486
        %v607 = vpop.f32.mrf.mxu0
        %v608 = vadd.f32 0.0, %v607
        %v609 = vpop.f32.mrf.mxu0
        %610 = vmatprep.mubr.f32.mxu0 0.0
        %611 = vmatmul.mubr.f32.gmra.mxu0 %v489
        %v612 = vpop.f32.mrf.mxu0
        %v613 = vadd.f32 0.0, %v612
        %v614 = vpop.f32.mrf.mxu0
        %615 = vmatprep.mubr.f32.mxu0 0.0
        %616 = vmatmul.mubr.f32.gmra.mxu0 %v492
        %v617 = vpop.f32.mrf.mxu0
        %v618 = vadd.f32 0.0, %v617
        %v619 = vpop.f32.mrf.mxu0
        %620 = vmatprep.mubr.f32.mxu0 0.0
        %621 = vmatmul.mubr.f32.gmra.mxu0 %v495
        %v622 = vpop.f32.mrf.mxu0
        %v623 = vadd.f32 0.0, %v622
        %v624 = vpop.f32.mrf.mxu0
        %625 = vmatprep.mubr.f32.mxu0 0.0
        %626 = vmatmul.mubr.f32.gmra.mxu0 %v498
        %v627 = vpop.f32.mrf.mxu0
        %v628 = vadd.f32 0.0, %v627
        %v629 = vpop.f32.mrf.mxu0
        %630 = vmatprep.mubr.f32.mxu0 0.0
        %631 = vmatmul.mubr.f32.gmra.mxu0 %v501
        %v632 = vpop.f32.mrf.mxu0
        %v633 = vadd.f32 0.0, %v632
        %v634 = vpop.f32.mrf.mxu0
        %635 = vmatprep.mubr.f32.mxu0 0.0
        %636 = vmatmul.mubr.f32.gmra.mxu0 %v504
        %v637 = vpop.f32.mrf.mxu0
        %v638 = vadd.f32 0.0, %v637
        %v639 = vpop.f32.mrf.mxu0
        %640 = vmatprep.mubr.f32.mxu0 0.0
        %641 = vmatmul.mubr.f32.gmra.mxu0 %v507
        %v642 = vpop.f32.mrf.mxu0
        %v643 = vadd.f32 0.0, %v642
        %v644 = vpop.f32.mrf.mxu0
        %645 = vmatprep.mubr.f32.mxu0 0.0
        %646 = vmatmul.mubr.f32.gmra.mxu0 %v510
        %v647 = vpop.f32.mrf.mxu0
        %v648 = vadd.f32 0.0, %v647
        %v649 = vpop.f32.mrf.mxu0
        %650 = vmatprep.mubr.f32.mxu0 0.0
        %651 = vmatmul.mubr.f32.gmra.mxu0 %v513
        %v652 = vpop.f32.mrf.mxu0
        %v653 = vadd.f32 0.0, %v652
        %v654 = vpop.f32.mrf.mxu0
        %655 = vmatprep.mubr.f32.mxu0 0.0
        %656 = vmatmul.mubr.f32.gmra.mxu0 %v516
        %v657 = vpop.f32.mrf.mxu0
        %v658 = vadd.f32 0.0, %v657
        %v659 = vpop.f32.mrf.mxu0
        %660 = vmatprep.mubr.f32.mxu0 0.0
        %661 = vmatmul.mubr.f32.gmra.mxu0 %v519
        %v662 = vpop.f32.mrf.mxu0
        %v663 = vadd.f32 0.0, %v662
        %v664 = vpop.f32.mrf.mxu0
        %665 = vdwg.mxu0
        %v666 = vld [vmem:[#allocation3] sm:$0xff]
        %v667 = vld [vmem:[#allocation3 + $0x8] sm:$0xff]
        %v668 = vld [vmem:[#allocation3 + $0x10] sm:$0xff]
        %v669 = vld [vmem:[#allocation3 + $0x18] sm:$0xff]
        %v670 = vld [vmem:[#allocation3 + $0x20] sm:$0xff]
        %v671 = vld [vmem:[#allocation3 + $0x28] sm:$0xff]
        %v672 = vld [vmem:[#allocation3 + $0x30] sm:$0xff]
        %v673 = vld [vmem:[#allocation3 + $0x38] sm:$0xff]
        %v674 = vld [vmem:[#allocation3 + $0x40] sm:$0xff]
        %v675 = vld [vmem:[#allocation3 + $0x48] sm:$0xff]
        %v676 = vld [vmem:[#allocation3 + $0x50] sm:$0xff]
        %v677 = vld [vmem:[#allocation3 + $0x58] sm:$0xff]
        %v678 = vld [vmem:[#allocation3 + $0x60] sm:$0xff]
        %v679 = vld [vmem:[#allocation3 + $0x68] sm:$0xff]
        %v680 = vld [vmem:[#allocation3 + $0x70] sm:$0xff]
        %v681 = vld [vmem:[#allocation3 + $0x78] sm:$0xff]
        %682 = vmax.xlane.f32.xlu0 %v395
        %v683 = vpop.xlane.xlu0 %682
        %684 = vmax.xlane.f32.xlu0 %v400
        %v685 = vpop.xlane.xlu0 %684
        %686 = vmax.xlane.f32.xlu0 %v405
        %v687 = vpop.xlane.xlu0 %686
        %688 = vmax.xlane.f32.xlu0 %v410
        %v689 = vpop.xlane.xlu0 %688
        %690 = vmax.xlane.f32.xlu0 %v415
        %v691 = vpop.xlane.xlu0 %690
        %692 = vmax.xlane.f32.xlu0 %v420
        %v693 = vpop.xlane.xlu0 %692
        %694 = vmax.xlane.f32.xlu0 %v425
        %v695 = vpop.xlane.xlu0 %694
        %696 = vmax.xlane.f32.xlu0 %v430
        %v697 = vpop.xlane.xlu0 %696
        %698 = vmax.xlane.f32.xlu0 %v435
        %v699 = vpop.xlane.xlu0 %698
        %700 = vmax.xlane.f32.xlu0 %v440
        %v701 = vpop.xlane.xlu0 %700
        %702 = vmax.xlane.f32.xlu0 %v445
        %v703 = vpop.xlane.xlu0 %702
        %704 = vmax.xlane.f32.xlu0 %v450
        %v705 = vpop.xlane.xlu0 %704
        %706 = vmax.xlane.f32.xlu0 %v455
        %v707 = vpop.xlane.xlu0 %706
        %708 = vmax.xlane.f32.xlu0 %v460
        %v709 = vpop.xlane.xlu0 %708
        %710 = vmax.xlane.f32.xlu0 %v465
        %v711 = vpop.xlane.xlu0 %710
        %712 = vmax.xlane.f32.xlu0 %v470
        %v713 = vpop.xlane.xlu0 %712
        %v714 = vmax.f32 %v666, %v683
        %v715 = vmax.f32 %v667, %v685
        %v716 = vmax.f32 %v668, %v687
        %v717 = vmax.f32 %v669, %v689
        %v718 = vmax.f32 %v670, %v691
        %v719 = vmax.f32 %v671, %v693
        %v720 = vmax.f32 %v672, %v695
        %v721 = vmax.f32 %v673, %v697
        %v722 = vmax.f32 %v674, %v699
        %v723 = vmax.f32 %v675, %v701
        %v724 = vmax.f32 %v676, %v703
        %v725 = vmax.f32 %v677, %v705
        %v726 = vmax.f32 %v678, %v707
        %v727 = vmax.f32 %v679, %v709
        %v728 = vmax.f32 %v680, %v711
        %v729 = vmax.f32 %v681, %v713
        %v730 = vsub.f32 %v666, %v714
        %v731 = vsub.f32 %v667, %v715
        %v732 = vsub.f32 %v668, %v716
        %v733 = vsub.f32 %v669, %v717
        %v734 = vsub.f32 %v670, %v718
        %v735 = vsub.f32 %v671, %v719
        %v736 = vsub.f32 %v672, %v720
        %v737 = vsub.f32 %v673, %v721
        %v738 = vsub.f32 %v674, %v722
        %v739 = vsub.f32 %v675, %v723
        %v740 = vsub.f32 %v676, %v724
        %v741 = vsub.f32 %v677, %v725
        %v742 = vsub.f32 %v678, %v726
        %v743 = vsub.f32 %v679, %v727
        %v744 = vsub.f32 %v680, %v728
        %v745 = vsub.f32 %v681, %v729
        %v746 = vmul.f32 %v730, 1.442695
        %v747 = vpow.pop %v746
        %v748 = vmul.f32 %v731, 1.442695
        %v749 = vpow.pop %v748
        %v750 = vmul.f32 %v732, 1.442695
        %v751 = vpow.pop %v750
        %v752 = vmul.f32 %v733, 1.442695
        %v753 = vpow.pop %v752
        %v754 = vmul.f32 %v734, 1.442695
        %v755 = vpow.pop %v754
        %v756 = vmul.f32 %v735, 1.442695
        %v757 = vpow.pop %v756
        %v758 = vmul.f32 %v736, 1.442695
        %v759 = vpow.pop %v758
        %v760 = vmul.f32 %v737, 1.442695
        %v761 = vpow.pop %v760
        %v762 = vmul.f32 %v738, 1.442695
        %v763 = vpow.pop %v762
        %v764 = vmul.f32 %v739, 1.442695
        %v765 = vpow.pop %v764
        %v766 = vmul.f32 %v740, 1.442695
        %v767 = vpow.pop %v766
        %v768 = vmul.f32 %v741, 1.442695
        %v769 = vpow.pop %v768
        %v770 = vmul.f32 %v742, 1.442695
        %v771 = vpow.pop %v770
        %v772 = vmul.f32 %v743, 1.442695
        %v773 = vpow.pop %v772
        %v774 = vmul.f32 %v744, 1.442695
        %v775 = vpow.pop %v774
        %v776 = vmul.f32 %v745, 1.442695
        %v777 = vpow.pop %v776
        %779 = vset.pattern.permute.xlu0 0
        %780 = vperm.xlu0 %779, %v714
        %v781 = vpop.permute.xlu0 %780
        %784 = vset.pattern.permute.xlu0 0
        %785 = vperm.xlu0 %784, %v715
        %v786 = vpop.permute.xlu0 %785
        %789 = vset.pattern.permute.xlu0 0
        %790 = vperm.xlu0 %789, %v716
        %v791 = vpop.permute.xlu0 %790
        %794 = vset.pattern.permute.xlu0 0
        %795 = vperm.xlu0 %794, %v717
        %v796 = vpop.permute.xlu0 %795
        %799 = vset.pattern.permute.xlu0 0
        %800 = vperm.xlu0 %799, %v718
        %v801 = vpop.permute.xlu0 %800
        %804 = vset.pattern.permute.xlu0 0
        %805 = vperm.xlu0 %804, %v719
        %v806 = vpop.permute.xlu0 %805
        %809 = vset.pattern.permute.xlu0 0
        %810 = vperm.xlu0 %809, %v720
        %v811 = vpop.permute.xlu0 %810
        %814 = vset.pattern.permute.xlu0 0
        %815 = vperm.xlu0 %814, %v721
        %v816 = vpop.permute.xlu0 %815
        %819 = vset.pattern.permute.xlu0 0
        %820 = vperm.xlu0 %819, %v722
        %v821 = vpop.permute.xlu0 %820
        %824 = vset.pattern.permute.xlu0 0
        %825 = vperm.xlu0 %824, %v723
        %v826 = vpop.permute.xlu0 %825
        %829 = vset.pattern.permute.xlu0 0
        %830 = vperm.xlu0 %829, %v724
        %v831 = vpop.permute.xlu0 %830
        %834 = vset.pattern.permute.xlu0 0
        %835 = vperm.xlu0 %834, %v725
        %v836 = vpop.permute.xlu0 %835
        %839 = vset.pattern.permute.xlu0 0
        %840 = vperm.xlu0 %839, %v726
        %v841 = vpop.permute.xlu0 %840
        %844 = vset.pattern.permute.xlu0 0
        %845 = vperm.xlu0 %844, %v727
        %v846 = vpop.permute.xlu0 %845
        %849 = vset.pattern.permute.xlu0 0
        %850 = vperm.xlu0 %849, %v728
        %v851 = vpop.permute.xlu0 %850
        %854 = vset.pattern.permute.xlu0 0
        %855 = vperm.xlu0 %854, %v729
        %v856 = vpop.permute.xlu0 %855
        %v858 = vsub.f32 %v395, %v781
        %v859 = vsub.f32 %v400, %v786
        %v860 = vsub.f32 %v405, %v791
        %v861 = vsub.f32 %v410, %v796
        %v862 = vsub.f32 %v415, %v801
        %v863 = vsub.f32 %v420, %v806
        %v864 = vsub.f32 %v425, %v811
        %v865 = vsub.f32 %v430, %v816
        %v866 = vsub.f32 %v435, %v821
        %v867 = vsub.f32 %v440, %v826
        %v868 = vsub.f32 %v445, %v831
        %v869 = vsub.f32 %v450, %v836
        %v870 = vsub.f32 %v455, %v841
        %v871 = vsub.f32 %v460, %v846
        %v872 = vsub.f32 %v465, %v851
        %v873 = vsub.f32 %v470, %v856
        %v874 = vmul.f32 %v858, 1.442695
        %v875 = vpow.pop %v874
        %v876 = vmul.f32 %v859, 1.442695
        %v877 = vpow.pop %v876
        %v878 = vmul.f32 %v860, 1.442695
        %v879 = vpow.pop %v878
        %v880 = vmul.f32 %v861, 1.442695
        %v881 = vpow.pop %v880
        %v882 = vmul.f32 %v862, 1.442695
        %v883 = vpow.pop %v882
        %v884 = vmul.f32 %v863, 1.442695
        %v885 = vpow.pop %v884
        %v886 = vmul.f32 %v864, 1.442695
        %v887 = vpow.pop %v886
        %v888 = vmul.f32 %v865, 1.442695
        %v889 = vpow.pop %v888
        %v890 = vmul.f32 %v866, 1.442695
        %v891 = vpow.pop %v890
        %v892 = vmul.f32 %v867, 1.442695
        %v893 = vpow.pop %v892
        %v894 = vmul.f32 %v868, 1.442695
        %v895 = vpow.pop %v894
        %v896 = vmul.f32 %v869, 1.442695
        %v897 = vpow.pop %v896
        %v898 = vmul.f32 %v870, 1.442695
        %v899 = vpow.pop %v898
        %v900 = vmul.f32 %v871, 1.442695
        %v901 = vpow.pop %v900
        %v902 = vmul.f32 %v872, 1.442695
        %v903 = vpow.pop %v902
        %v904 = vmul.f32 %v873, 1.442695
        %v905 = vpow.pop %v904
        %v906 = vld [vmem:[#allocation4] sm:$0xff]
        %v907 = vld [vmem:[#allocation4 + $0x8] sm:$0xff]
        %v908 = vld [vmem:[#allocation4 + $0x10] sm:$0xff]
        %v909 = vld [vmem:[#allocation4 + $0x18] sm:$0xff]
        %v910 = vld [vmem:[#allocation4 + $0x20] sm:$0xff]
        %v911 = vld [vmem:[#allocation4 + $0x28] sm:$0xff]
        %v912 = vld [vmem:[#allocation4 + $0x30] sm:$0xff]
        %v913 = vld [vmem:[#allocation4 + $0x38] sm:$0xff]
        %v914 = vld [vmem:[#allocation4 + $0x40] sm:$0xff]
        %v915 = vld [vmem:[#allocation4 + $0x48] sm:$0xff]
        %v916 = vld [vmem:[#allocation4 + $0x50] sm:$0xff]
        %v917 = vld [vmem:[#allocation4 + $0x58] sm:$0xff]
        %v918 = vld [vmem:[#allocation4 + $0x60] sm:$0xff]
        %v919 = vld [vmem:[#allocation4 + $0x68] sm:$0xff]
        %v920 = vld [vmem:[#allocation4 + $0x70] sm:$0xff]
        %v921 = vld [vmem:[#allocation4 + $0x78] sm:$0xff]
        %v922 = vmul.f32 %v747, %v906
        %v923 = vmul.f32 %v749, %v907
        %v924 = vmul.f32 %v751, %v908
        %v925 = vmul.f32 %v753, %v909
        %v926 = vmul.f32 %v755, %v910
        %v927 = vmul.f32 %v757, %v911
        %v928 = vmul.f32 %v759, %v912
        %v929 = vmul.f32 %v761, %v913
        %v930 = vmul.f32 %v763, %v914
        %v931 = vmul.f32 %v765, %v915
        %v932 = vmul.f32 %v767, %v916
        %v933 = vmul.f32 %v769, %v917
        %v934 = vmul.f32 %v771, %v918
        %v935 = vmul.f32 %v773, %v919
        %v936 = vmul.f32 %v775, %v920
        %v937 = vmul.f32 %v777, %v921
        %938 = vadd.xlane.f32.xlu0 %v875
        %v939 = vpop.xlane.xlu0 %938
        %940 = vadd.xlane.f32.xlu0 %v877
        %v941 = vpop.xlane.xlu0 %940
        %942 = vadd.xlane.f32.xlu0 %v879
        %v943 = vpop.xlane.xlu0 %942
        %944 = vadd.xlane.f32.xlu0 %v881
        %v945 = vpop.xlane.xlu0 %944
        %946 = vadd.xlane.f32.xlu0 %v883
        %v947 = vpop.xlane.xlu0 %946
        %948 = vadd.xlane.f32.xlu0 %v885
        %v949 = vpop.xlane.xlu0 %948
        %950 = vadd.xlane.f32.xlu0 %v887
        %v951 = vpop.xlane.xlu0 %950
        %952 = vadd.xlane.f32.xlu0 %v889
        %v953 = vpop.xlane.xlu0 %952
        %954 = vadd.xlane.f32.xlu0 %v891
        %v955 = vpop.xlane.xlu0 %954
        %956 = vadd.xlane.f32.xlu0 %v893
        %v957 = vpop.xlane.xlu0 %956
        %958 = vadd.xlane.f32.xlu0 %v895
        %v959 = vpop.xlane.xlu0 %958
        %960 = vadd.xlane.f32.xlu0 %v897
        %v961 = vpop.xlane.xlu0 %960
        %962 = vadd.xlane.f32.xlu0 %v899
        %v963 = vpop.xlane.xlu0 %962
        %964 = vadd.xlane.f32.xlu0 %v901
        %v965 = vpop.xlane.xlu0 %964
        %966 = vadd.xlane.f32.xlu0 %v903
        %v967 = vpop.xlane.xlu0 %966
        %968 = vadd.xlane.f32.xlu0 %v905
        %v969 = vpop.xlane.xlu0 %968
        %v970 = vadd.f32 %v922, %v939
        %v971 = vadd.f32 %v923, %v941
        %v972 = vadd.f32 %v924, %v943
        %v973 = vadd.f32 %v925, %v945
        %v974 = vadd.f32 %v926, %v947
        %v975 = vadd.f32 %v927, %v949
        %v976 = vadd.f32 %v928, %v951
        %v977 = vadd.f32 %v929, %v953
        %v978 = vadd.f32 %v930, %v955
        %v979 = vadd.f32 %v931, %v957
        %v980 = vadd.f32 %v932, %v959
        %v981 = vadd.f32 %v933, %v961
        %v982 = vadd.f32 %v934, %v963
        %v983 = vadd.f32 %v935, %v965
        %v984 = vadd.f32 %v936, %v967
        %v985 = vadd.f32 %v937, %v969
        %vm986 = vcmask 7168
        %987 = vst.msk [vmem:[#allocation4] sm:$0xff] %vm986, %v970
        %988 = vst.msk [vmem:[#allocation4 + $0x8] sm:$0xff] %vm986, %v971
        %989 = vst.msk [vmem:[#allocation4 + $0x10] sm:$0xff] %vm986, %v972
        %990 = vst.msk [vmem:[#allocation4 + $0x18] sm:$0xff] %vm986, %v973
        %991 = vst.msk [vmem:[#allocation4 + $0x20] sm:$0xff] %vm986, %v974
        %992 = vst.msk [vmem:[#allocation4 + $0x28] sm:$0xff] %vm986, %v975
        %993 = vst.msk [vmem:[#allocation4 + $0x30] sm:$0xff] %vm986, %v976
        %994 = vst.msk [vmem:[#allocation4 + $0x38] sm:$0xff] %vm986, %v977
        %995 = vst.msk [vmem:[#allocation4 + $0x40] sm:$0xff] %vm986, %v978
        %996 = vst.msk [vmem:[#allocation4 + $0x48] sm:$0xff] %vm986, %v979
        %997 = vst.msk [vmem:[#allocation4 + $0x50] sm:$0xff] %vm986, %v980
        %998 = vst.msk [vmem:[#allocation4 + $0x58] sm:$0xff] %vm986, %v981
        %999 = vst.msk [vmem:[#allocation4 + $0x60] sm:$0xff] %vm986, %v982
        %1000 = vst.msk [vmem:[#allocation4 + $0x68] sm:$0xff] %vm986, %v983
        %1001 = vst.msk [vmem:[#allocation4 + $0x70] sm:$0xff] %vm986, %v984
        %1002 = vst.msk [vmem:[#allocation4 + $0x78] sm:$0xff] %vm986, %v985
        %1003 = vst.msk [vmem:[#allocation3] sm:$0xff] %vm986, %v714
        %1004 = vst.msk [vmem:[#allocation3 + $0x8] sm:$0xff] %vm986, %v715
        %1005 = vst.msk [vmem:[#allocation3 + $0x10] sm:$0xff] %vm986, %v716
        %1006 = vst.msk [vmem:[#allocation3 + $0x18] sm:$0xff] %vm986, %v717
        %1007 = vst.msk [vmem:[#allocation3 + $0x20] sm:$0xff] %vm986, %v718
        %1008 = vst.msk [vmem:[#allocation3 + $0x28] sm:$0xff] %vm986, %v719
        %1009 = vst.msk [vmem:[#allocation3 + $0x30] sm:$0xff] %vm986, %v720
        %1010 = vst.msk [vmem:[#allocation3 + $0x38] sm:$0xff] %vm986, %v721
        %1011 = vst.msk [vmem:[#allocation3 + $0x40] sm:$0xff] %vm986, %v722
        %1012 = vst.msk [vmem:[#allocation3 + $0x48] sm:$0xff] %vm986, %v723
        %1013 = vst.msk [vmem:[#allocation3 + $0x50] sm:$0xff] %vm986, %v724
        %1014 = vst.msk [vmem:[#allocation3 + $0x58] sm:$0xff] %vm986, %v725
        %1015 = vst.msk [vmem:[#allocation3 + $0x60] sm:$0xff] %vm986, %v726
        %1016 = vst.msk [vmem:[#allocation3 + $0x68] sm:$0xff] %vm986, %v727
        %1017 = vst.msk [vmem:[#allocation3 + $0x70] sm:$0xff] %vm986, %v728
        %1018 = vst.msk [vmem:[#allocation3 + $0x78] sm:$0xff] %vm986, %v729
        %1019 = vmatprep.subr.mxu0 0.0
        %1020 = vmatpush1.xpose.msra.mxu0 0.0
        %1021 = vmatprep.subr.mxu0 0.0
        %1022 = vmatpush1.xpose.msra.mxu0 0.0
        %1023 = vmatprep.subr.mxu0 0.0
        %1024 = vmatpush1.xpose.msra.mxu0 0.0
        %1025 = vmatprep.subr.mxu0 0.0
        %1026 = vmatpush1.xpose.msra.mxu0 0.0
        %1027 = vmatprep.subr.mxu0 0.0
        %1028 = vmatpush1.xpose.msra.mxu0 0.0
        %1029 = vmatprep.subr.mxu0 0.0
        %1030 = vmatpush1.xpose.msra.mxu0 0.0
        %1031 = vmatprep.subr.mxu0 0.0
        %1032 = vmatpush1.xpose.msra.mxu0 0.0
        %1033 = vmatprep.subr.mxu0 0.0
        %1034 = vmatpush1.xpose.msra.mxu0 0.0
        %1035 = vmatprep.subr.mxu0 0.0
        %1036 = vmatpush1.xpose.msra.mxu0 0.0
        %1037 = vmatprep.subr.mxu0 0.0
        %1038 = vmatpush1.xpose.msra.mxu0 0.0
        %1039 = vmatprep.subr.mxu0 0.0
        %1040 = vmatpush1.xpose.msra.mxu0 0.0
        %1041 = vmatprep.subr.mxu0 0.0
        %1042 = vmatpush1.xpose.msra.mxu0 0.0
        %1043 = vmatprep.subr.mxu0 0.0
        %1044 = vmatpush1.xpose.msra.mxu0 %v603
        %1045 = vmatprep.subr.mxu0 0.0
        %1046 = vmatpush1.xpose.msra.mxu0 %v598
        %1047 = vmatprep.subr.mxu0 0.0
        %1048 = vmatpush1.xpose.msra.mxu0 %v593
        %1049 = vmatprep.subr.mxu0 0.0
        %1050 = vmatpush1.xpose.msra.mxu0 %v588
        %1051 = vmatprep.subr.mxu0 0.0
        %1052 = vmatpush2.xpose.msra.mxu0 0.0
        %1053 = vmatprep.subr.mxu0 0.0
        %1054 = vmatpush2.xpose.msra.mxu0 0.0
        %1055 = vmatprep.subr.mxu0 0.0
        %1056 = vmatpush2.xpose.msra.mxu0 0.0
        %1057 = vmatprep.subr.mxu0 0.0
        %1058 = vmatpush2.xpose.msra.mxu0 0.0
        %1059 = vmatprep.subr.mxu0 0.0
        %1060 = vmatpush2.xpose.msra.mxu0 0.0
        %1061 = vmatprep.subr.mxu0 0.0
        %1062 = vmatpush2.xpose.msra.mxu0 0.0
        %1063 = vmatprep.subr.mxu0 0.0
        %1064 = vmatpush2.xpose.msra.mxu0 0.0
        %1065 = vmatprep.subr.mxu0 0.0
        %1066 = vmatpush2.xpose.msra.mxu0 0.0
        %1067 = vmatprep.subr.mxu0 0.0
        %1068 = vmatpush2.xpose.msra.mxu0 0.0
        %1069 = vmatprep.subr.mxu0 0.0
        %1070 = vmatpush2.xpose.msra.mxu0 0.0
        %1071 = vmatprep.subr.mxu0 0.0
        %1072 = vmatpush2.xpose.msra.mxu0 0.0
        %1073 = vmatprep.subr.mxu0 0.0
        %1074 = vmatpush2.xpose.msra.mxu0 0.0
        %1075 = vmatprep.subr.mxu0 0.0
        %1076 = vmatpush2.xpose.msra.mxu0 0.0
        %1077 = vmatprep.subr.mxu0 0.0
        %1078 = vmatpush2.xpose.msra.mxu0 0.0
        %1079 = vmatprep.subr.mxu0 0.0
        %1080 = vmatpush2.xpose.msra.mxu0 0.0
        %1081 = vmatprep.subr.mxu0 0.0
        %1082 = vmatpush2.xpose.msra.mxu0 0.0
        %1083 = vmatprep.mubr.f32.mxu0 0.0
        %1084 = vmatmul.mubr.f32.gmra.mxu0 %v875
        %v1085 = vpop.f32.mrf.mxu0
        %v1086 = vadd.f32 0.0, %v1085
        %v1087 = vpop.f32.mrf.mxu0
        %1088 = vmatprep.mubr.f32.mxu0 0.0
        %1089 = vmatmul.mubr.f32.gmra.mxu0 %v877
        %v1090 = vpop.f32.mrf.mxu0
        %v1091 = vadd.f32 0.0, %v1090
        %v1092 = vpop.f32.mrf.mxu0
        %1093 = vmatprep.mubr.f32.mxu0 0.0
        %1094 = vmatmul.mubr.f32.gmra.mxu0 %v879
        %v1095 = vpop.f32.mrf.mxu0
        %v1096 = vadd.f32 0.0, %v1095
        %v1097 = vpop.f32.mrf.mxu0
        %1098 = vmatprep.mubr.f32.mxu0 0.0
        %1099 = vmatmul.mubr.f32.gmra.mxu0 %v881
        %v1100 = vpop.f32.mrf.mxu0
        %v1101 = vadd.f32 0.0, %v1100
        %v1102 = vpop.f32.mrf.mxu0
        %1103 = vdwg.mxu0
        %v1104 = vld [vmem:[#allocation2] sm:$0xff]
        %v1105 = vld [vmem:[#allocation2 + $0x8] sm:$0xff]
        %v1106 = vld [vmem:[#allocation2 + $0x10] sm:$0xff]
        %v1107 = vld [vmem:[#allocation2 + $0x18] sm:$0xff]
        %1109 = vset.pattern.permute.xlu0 0
        %1110 = vperm.xlu0 %1109, %v747
        %v1111 = vpop.permute.xlu0 %1110
        %1114 = vset.pattern.permute.xlu0 0
        %1115 = vperm.xlu0 %1114, %v749
        %v1116 = vpop.permute.xlu0 %1115
        %1119 = vset.pattern.permute.xlu0 0
        %1120 = vperm.xlu0 %1119, %v751
        %v1121 = vpop.permute.xlu0 %1120
        %1124 = vset.pattern.permute.xlu0 0
        %1125 = vperm.xlu0 %1124, %v753
        %v1126 = vpop.permute.xlu0 %1125
        %v1128 = vmul.f32 %v1111, %v1104
        %v1129 = vmul.f32 %v1116, %v1105
        %v1130 = vmul.f32 %v1121, %v1106
        %v1131 = vmul.f32 %v1126, %v1107
        %v1132 = vadd.f32 %v1128, %v1086
        %v1133 = vadd.f32 %v1129, %v1091
        %v1134 = vadd.f32 %v1130, %v1096
        %v1135 = vadd.f32 %v1131, %v1101
        %vm1136 = vcmask 261120
        %1137 = vst.msk [vmem:[#allocation2] sm:$0xff] %vm1136, %v1132
        %1138 = vst.msk [vmem:[#allocation2 + $0x8] sm:$0xff] %vm1136, %v1133
        %1139 = vst.msk [vmem:[#allocation2 + $0x10] sm:$0xff] %vm1136, %v1134
        %1140 = vst.msk [vmem:[#allocation2 + $0x18] sm:$0xff] %vm1136, %v1135
        %1141 = vmatprep.subr.mxu0 0.0
        %1142 = vmatpush1.xpose.msra.mxu0 0.0
        %1143 = vmatprep.subr.mxu0 0.0
        %1144 = vmatpush1.xpose.msra.mxu0 0.0
        %1145 = vmatprep.subr.mxu0 0.0
        %1146 = vmatpush1.xpose.msra.mxu0 0.0
        %1147 = vmatprep.subr.mxu0 0.0
        %1148 = vmatpush1.xpose.msra.mxu0 0.0
        %1149 = vmatprep.subr.mxu0 0.0
        %1150 = vmatpush1.xpose.msra.mxu0 0.0
        %1151 = vmatprep.subr.mxu0 0.0
        %1152 = vmatpush1.xpose.msra.mxu0 0.0
        %1153 = vmatprep.subr.mxu0 0.0
        %1154 = vmatpush1.xpose.msra.mxu0 0.0
        %1155 = vmatprep.subr.mxu0 0.0
        %1156 = vmatpush1.xpose.msra.mxu0 0.0
        %1157 = vmatprep.subr.mxu0 0.0
        %1158 = vmatpush1.xpose.msra.mxu0 0.0
        %1159 = vmatprep.subr.mxu0 0.0
        %1160 = vmatpush1.xpose.msra.mxu0 0.0
        %1161 = vmatprep.subr.mxu0 0.0
        %1162 = vmatpush1.xpose.msra.mxu0 0.0
        %1163 = vmatprep.subr.mxu0 0.0
        %1164 = vmatpush1.xpose.msra.mxu0 0.0
        %1165 = vmatprep.subr.mxu0 0.0
        %1166 = vmatpush1.xpose.msra.mxu0 %v623
        %1167 = vmatprep.subr.mxu0 0.0
        %1168 = vmatpush1.xpose.msra.mxu0 %v618
        %1169 = vmatprep.subr.mxu0 0.0
        %1170 = vmatpush1.xpose.msra.mxu0 %v613
        %1171 = vmatprep.subr.mxu0 0.0
        %1172 = vmatpush1.xpose.msra.mxu0 %v608
        %1173 = vmatprep.subr.mxu0 0.0
        %1174 = vmatpush2.xpose.msra.mxu0 0.0
        %1175 = vmatprep.subr.mxu0 0.0
        %1176 = vmatpush2.xpose.msra.mxu0 0.0
        %1177 = vmatprep.subr.mxu0 0.0
        %1178 = vmatpush2.xpose.msra.mxu0 0.0
        %1179 = vmatprep.subr.mxu0 0.0
        %1180 = vmatpush2.xpose.msra.mxu0 0.0
        %1181 = vmatprep.subr.mxu0 0.0
        %1182 = vmatpush2.xpose.msra.mxu0 0.0
        %1183 = vmatprep.subr.mxu0 0.0
        %1184 = vmatpush2.xpose.msra.mxu0 0.0
        %1185 = vmatprep.subr.mxu0 0.0
        %1186 = vmatpush2.xpose.msra.mxu0 0.0
        %1187 = vmatprep.subr.mxu0 0.0
        %1188 = vmatpush2.xpose.msra.mxu0 0.0
        %1189 = vmatprep.subr.mxu0 0.0
        %1190 = vmatpush2.xpose.msra.mxu0 0.0
        %1191 = vmatprep.subr.mxu0 0.0
        %1192 = vmatpush2.xpose.msra.mxu0 0.0
        %1193 = vmatprep.subr.mxu0 0.0
        %1194 = vmatpush2.xpose.msra.mxu0 0.0
        %1195 = vmatprep.subr.mxu0 0.0
        %1196 = vmatpush2.xpose.msra.mxu0 0.0
        %1197 = vmatprep.subr.mxu0 0.0
        %1198 = vmatpush2.xpose.msra.mxu0 0.0
        %1199 = vmatprep.subr.mxu0 0.0
        %1200 = vmatpush2.xpose.msra.mxu0 0.0
        %1201 = vmatprep.subr.mxu0 0.0
        %1202 = vmatpush2.xpose.msra.mxu0 0.0
        %1203 = vmatprep.subr.mxu0 0.0
        %1204 = vmatpush2.xpose.msra.mxu0 0.0
        %1205 = vmatprep.mubr.f32.mxu0 0.0
        %1206 = vmatmul.mubr.f32.gmra.mxu0 %v883
        %v1207 = vpop.f32.mrf.mxu0
        %v1208 = vadd.f32 0.0, %v1207
        %v1209 = vpop.f32.mrf.mxu0
        %1210 = vmatprep.mubr.f32.mxu0 0.0
        %1211 = vmatmul.mubr.f32.gmra.mxu0 %v885
        %v1212 = vpop.f32.mrf.mxu0
        %v1213 = vadd.f32 0.0, %v1212
        %v1214 = vpop.f32.mrf.mxu0
        %1215 = vmatprep.mubr.f32.mxu0 0.0
        %1216 = vmatmul.mubr.f32.gmra.mxu0 %v887
        %v1217 = vpop.f32.mrf.mxu0
        %v1218 = vadd.f32 0.0, %v1217
        %v1219 = vpop.f32.mrf.mxu0
        %1220 = vmatprep.mubr.f32.mxu0 0.0
        %1221 = vmatmul.mubr.f32.gmra.mxu0 %v889
        %v1222 = vpop.f32.mrf.mxu0
        %v1223 = vadd.f32 0.0, %v1222
        %v1224 = vpop.f32.mrf.mxu0
        %1225 = vdwg.mxu0
        %v1226 = vld [vmem:[#allocation2 + $0x20] sm:$0xff]
        %v1227 = vld [vmem:[#allocation2 + $0x28] sm:$0xff]
        %v1228 = vld [vmem:[#allocation2 + $0x30] sm:$0xff]
        %v1229 = vld [vmem:[#allocation2 + $0x38] sm:$0xff]
        %1231 = vset.pattern.permute.xlu0 0
        %1232 = vperm.xlu0 %1231, %v755
        %v1233 = vpop.permute.xlu0 %1232
        %1236 = vset.pattern.permute.xlu0 0
        %1237 = vperm.xlu0 %1236, %v757
        %v1238 = vpop.permute.xlu0 %1237
        %1241 = vset.pattern.permute.xlu0 0
        %1242 = vperm.xlu0 %1241, %v759
        %v1243 = vpop.permute.xlu0 %1242
        %1246 = vset.pattern.permute.xlu0 0
        %1247 = vperm.xlu0 %1246, %v761
        %v1248 = vpop.permute.xlu0 %1247
        %v1250 = vmul.f32 %v1233, %v1226
        %v1251 = vmul.f32 %v1238, %v1227
        %v1252 = vmul.f32 %v1243, %v1228
        %v1253 = vmul.f32 %v1248, %v1229
        %v1254 = vadd.f32 %v1250, %v1208
        %v1255 = vadd.f32 %v1251, %v1213
        %v1256 = vadd.f32 %v1252, %v1218
        %v1257 = vadd.f32 %v1253, %v1223
        %1258 = vst.msk [vmem:[#allocation2 + $0x20] sm:$0xff] %vm1136, %v1254
        %1259 = vst.msk [vmem:[#allocation2 + $0x28] sm:$0xff] %vm1136, %v1255
        %1260 = vst.msk [vmem:[#allocation2 + $0x30] sm:$0xff] %vm1136, %v1256
        %1261 = vst.msk [vmem:[#allocation2 + $0x38] sm:$0xff] %vm1136, %v1257
        %1262 = vmatprep.subr.mxu0 0.0
        %1263 = vmatpush1.xpose.msra.mxu0 0.0
        %1264 = vmatprep.subr.mxu0 0.0
        %1265 = vmatpush1.xpose.msra.mxu0 0.0
        %1266 = vmatprep.subr.mxu0 0.0
        %1267 = vmatpush1.xpose.msra.mxu0 0.0
        %1268 = vmatprep.subr.mxu0 0.0
        %1269 = vmatpush1.xpose.msra.mxu0 0.0
        %1270 = vmatprep.subr.mxu0 0.0
        %1271 = vmatpush1.xpose.msra.mxu0 0.0
        %1272 = vmatprep.subr.mxu0 0.0
        %1273 = vmatpush1.xpose.msra.mxu0 0.0
        %1274 = vmatprep.subr.mxu0 0.0
        %1275 = vmatpush1.xpose.msra.mxu0 0.0
        %1276 = vmatprep.subr.mxu0 0.0
        %1277 = vmatpush1.xpose.msra.mxu0 0.0
        %1278 = vmatprep.subr.mxu0 0.0
        %1279 = vmatpush1.xpose.msra.mxu0 0.0
        %1280 = vmatprep.subr.mxu0 0.0
        %1281 = vmatpush1.xpose.msra.mxu0 0.0
        %1282 = vmatprep.subr.mxu0 0.0
        %1283 = vmatpush1.xpose.msra.mxu0 0.0
        %1284 = vmatprep.subr.mxu0 0.0
        %1285 = vmatpush1.xpose.msra.mxu0 0.0
        %1286 = vmatprep.subr.mxu0 0.0
        %1287 = vmatpush1.xpose.msra.mxu0 %v643
        %1288 = vmatprep.subr.mxu0 0.0
        %1289 = vmatpush1.xpose.msra.mxu0 %v638
        %1290 = vmatprep.subr.mxu0 0.0
        %1291 = vmatpush1.xpose.msra.mxu0 %v633
        %1292 = vmatprep.subr.mxu0 0.0
        %1293 = vmatpush1.xpose.msra.mxu0 %v628
        %1294 = vmatprep.subr.mxu0 0.0
        %1295 = vmatpush2.xpose.msra.mxu0 0.0
        %1296 = vmatprep.subr.mxu0 0.0
        %1297 = vmatpush2.xpose.msra.mxu0 0.0
        %1298 = vmatprep.subr.mxu0 0.0
        %1299 = vmatpush2.xpose.msra.mxu0 0.0
        %1300 = vmatprep.subr.mxu0 0.0
        %1301 = vmatpush2.xpose.msra.mxu0 0.0
        %1302 = vmatprep.subr.mxu0 0.0
        %1303 = vmatpush2.xpose.msra.mxu0 0.0
        %1304 = vmatprep.subr.mxu0 0.0
        %1305 = vmatpush2.xpose.msra.mxu0 0.0
        %1306 = vmatprep.subr.mxu0 0.0
        %1307 = vmatpush2.xpose.msra.mxu0 0.0
        %1308 = vmatprep.subr.mxu0 0.0
        %1309 = vmatpush2.xpose.msra.mxu0 0.0
        %1310 = vmatprep.subr.mxu0 0.0
        %1311 = vmatpush2.xpose.msra.mxu0 0.0
        %1312 = vmatprep.subr.mxu0 0.0
        %1313 = vmatpush2.xpose.msra.mxu0 0.0
        %1314 = vmatprep.subr.mxu0 0.0
        %1315 = vmatpush2.xpose.msra.mxu0 0.0
        %1316 = vmatprep.subr.mxu0 0.0
        %1317 = vmatpush2.xpose.msra.mxu0 0.0
        %1318 = vmatprep.subr.mxu0 0.0
        %1319 = vmatpush2.xpose.msra.mxu0 0.0
        %1320 = vmatprep.subr.mxu0 0.0
        %1321 = vmatpush2.xpose.msra.mxu0 0.0
        %1322 = vmatprep.subr.mxu0 0.0
        %1323 = vmatpush2.xpose.msra.mxu0 0.0
        %1324 = vmatprep.subr.mxu0 0.0
        %1325 = vmatpush2.xpose.msra.mxu0 0.0
        %1326 = vmatprep.mubr.f32.mxu0 0.0
        %1327 = vmatmul.mubr.f32.gmra.mxu0 %v891
        %v1328 = vpop.f32.mrf.mxu0
        %v1329 = vadd.f32 0.0, %v1328
        %v1330 = vpop.f32.mrf.mxu0
        %1331 = vmatprep.mubr.f32.mxu0 0.0
        %1332 = vmatmul.mubr.f32.gmra.mxu0 %v893
        %v1333 = vpop.f32.mrf.mxu0
        %v1334 = vadd.f32 0.0, %v1333
        %v1335 = vpop.f32.mrf.mxu0
        %1336 = vmatprep.mubr.f32.mxu0 0.0
        %1337 = vmatmul.mubr.f32.gmra.mxu0 %v895
        %v1338 = vpop.f32.mrf.mxu0
        %v1339 = vadd.f32 0.0, %v1338
        %v1340 = vpop.f32.mrf.mxu0
        %1341 = vmatprep.mubr.f32.mxu0 0.0
        %1342 = vmatmul.mubr.f32.gmra.mxu0 %v897
        %v1343 = vpop.f32.mrf.mxu0
        %v1344 = vadd.f32 0.0, %v1343
        %v1345 = vpop.f32.mrf.mxu0
        %1346 = vdwg.mxu0
        %v1347 = vld [vmem:[#allocation2 + $0x40] sm:$0xff]
        %v1348 = vld [vmem:[#allocation2 + $0x48] sm:$0xff]
        %v1349 = vld [vmem:[#allocation2 + $0x50] sm:$0xff]
        %v1350 = vld [vmem:[#allocation2 + $0x58] sm:$0xff]
        %1352 = vset.pattern.permute.xlu0 0
        %1353 = vperm.xlu0 %1352, %v763
        %v1354 = vpop.permute.xlu0 %1353
        %1357 = vset.pattern.permute.xlu0 0
        %1358 = vperm.xlu0 %1357, %v765
        %v1359 = vpop.permute.xlu0 %1358
        %1362 = vset.pattern.permute.xlu0 0
        %1363 = vperm.xlu0 %1362, %v767
        %v1364 = vpop.permute.xlu0 %1363
        %1367 = vset.pattern.permute.xlu0 0
        %1368 = vperm.xlu0 %1367, %v769
        %v1369 = vpop.permute.xlu0 %1368
        %v1371 = vmul.f32 %v1354, %v1347
        %v1372 = vmul.f32 %v1359, %v1348
        %v1373 = vmul.f32 %v1364, %v1349
        %v1374 = vmul.f32 %v1369, %v1350
        %v1375 = vadd.f32 %v1371, %v1329
        %v1376 = vadd.f32 %v1372, %v1334
        %v1377 = vadd.f32 %v1373, %v1339
        %v1378 = vadd.f32 %v1374, %v1344
        %1379 = vst.msk [vmem:[#allocation2 + $0x40] sm:$0xff] %vm1136, %v1375
        %1380 = vst.msk [vmem:[#allocation2 + $0x48] sm:$0xff] %vm1136, %v1376
        %1381 = vst.msk [vmem:[#allocation2 + $0x50] sm:$0xff] %vm1136, %v1377
        %1382 = vst.msk [vmem:[#allocation2 + $0x58] sm:$0xff] %vm1136, %v1378
        %1383 = vmatprep.subr.mxu0 0.0
        %1384 = vmatpush1.xpose.msra.mxu0 0.0
        %1385 = vmatprep.subr.mxu0 0.0
        %1386 = vmatpush1.xpose.msra.mxu0 0.0
        %1387 = vmatprep.subr.mxu0 0.0
        %1388 = vmatpush1.xpose.msra.mxu0 0.0
        %1389 = vmatprep.subr.mxu0 0.0
        %1390 = vmatpush1.xpose.msra.mxu0 0.0
        %1391 = vmatprep.subr.mxu0 0.0
        %1392 = vmatpush1.xpose.msra.mxu0 0.0
        %1393 = vmatprep.subr.mxu0 0.0
        %1394 = vmatpush1.xpose.msra.mxu0 0.0
        %1395 = vmatprep.subr.mxu0 0.0
        %1396 = vmatpush1.xpose.msra.mxu0 0.0
        %1397 = vmatprep.subr.mxu0 0.0
        %1398 = vmatpush1.xpose.msra.mxu0 0.0
        %1399 = vmatprep.subr.mxu0 0.0
        %1400 = vmatpush1.xpose.msra.mxu0 0.0
        %1401 = vmatprep.subr.mxu0 0.0
        %1402 = vmatpush1.xpose.msra.mxu0 0.0
        %1403 = vmatprep.subr.mxu0 0.0
        %1404 = vmatpush1.xpose.msra.mxu0 0.0
        %1405 = vmatprep.subr.mxu0 0.0
        %1406 = vmatpush1.xpose.msra.mxu0 0.0
        %1407 = vmatprep.subr.mxu0 0.0
        %1408 = vmatpush1.xpose.msra.mxu0 %v663
        %1409 = vmatprep.subr.mxu0 0.0
        %1410 = vmatpush1.xpose.msra.mxu0 %v658
        %1411 = vmatprep.subr.mxu0 0.0
        %1412 = vmatpush1.xpose.msra.mxu0 %v653
        %1413 = vmatprep.subr.mxu0 0.0
        %1414 = vmatpush1.xpose.msra.mxu0 %v648
        %1415 = vmatprep.subr.mxu0 0.0
        %1416 = vmatpush2.xpose.msra.mxu0 0.0
        %1417 = vmatprep.subr.mxu0 0.0
        %1418 = vmatpush2.xpose.msra.mxu0 0.0
        %1419 = vmatprep.subr.mxu0 0.0
        %1420 = vmatpush2.xpose.msra.mxu0 0.0
        %1421 = vmatprep.subr.mxu0 0.0
        %1422 = vmatpush2.xpose.msra.mxu0 0.0
        %1423 = vmatprep.subr.mxu0 0.0
        %1424 = vmatpush2.xpose.msra.mxu0 0.0
        %1425 = vmatprep.subr.mxu0 0.0
        %1426 = vmatpush2.xpose.msra.mxu0 0.0
        %1427 = vmatprep.subr.mxu0 0.0
        %1428 = vmatpush2.xpose.msra.mxu0 0.0
        %1429 = vmatprep.subr.mxu0 0.0
        %1430 = vmatpush2.xpose.msra.mxu0 0.0
        %1431 = vmatprep.subr.mxu0 0.0
        %1432 = vmatpush2.xpose.msra.mxu0 0.0
        %1433 = vmatprep.subr.mxu0 0.0
        %1434 = vmatpush2.xpose.msra.mxu0 0.0
        %1435 = vmatprep.subr.mxu0 0.0
        %1436 = vmatpush2.xpose.msra.mxu0 0.0
        %1437 = vmatprep.subr.mxu0 0.0
        %1438 = vmatpush2.xpose.msra.mxu0 0.0
        %1439 = vmatprep.subr.mxu0 0.0
        %1440 = vmatpush2.xpose.msra.mxu0 0.0
        %1441 = vmatprep.subr.mxu0 0.0
        %1442 = vmatpush2.xpose.msra.mxu0 0.0
        %1443 = vmatprep.subr.mxu0 0.0
        %1444 = vmatpush2.xpose.msra.mxu0 0.0
        %1445 = vmatprep.subr.mxu0 0.0
        %1446 = vmatpush2.xpose.msra.mxu0 0.0
        %1447 = vmatprep.mubr.f32.mxu0 0.0
        %1448 = vmatmul.mubr.f32.gmra.mxu0 %v899
        %v1449 = vpop.f32.mrf.mxu0
        %v1450 = vadd.f32 0.0, %v1449
        %v1451 = vpop.f32.mrf.mxu0
        %1452 = vmatprep.mubr.f32.mxu0 0.0
        %1453 = vmatmul.mubr.f32.gmra.mxu0 %v901
        %v1454 = vpop.f32.mrf.mxu0
        %v1455 = vadd.f32 0.0, %v1454
        %v1456 = vpop.f32.mrf.mxu0
        %1457 = vmatprep.mubr.f32.mxu0 0.0
        %1458 = vmatmul.mubr.f32.gmra.mxu0 %v903
        %v1459 = vpop.f32.mrf.mxu0
        %v1460 = vadd.f32 0.0, %v1459
        %v1461 = vpop.f32.mrf.mxu0
        %1462 = vmatprep.mubr.f32.mxu0 0.0
        %1463 = vmatmul.mubr.f32.gmra.mxu0 %v905
        %v1464 = vpop.f32.mrf.mxu0
        %v1465 = vadd.f32 0.0, %v1464
        %v1466 = vpop.f32.mrf.mxu0
        %1467 = vdwg.mxu0
        %v1468 = vld [vmem:[#allocation2 + $0x60] sm:$0xff]
        %v1469 = vld [vmem:[#allocation2 + $0x68] sm:$0xff]
        %v1470 = vld [vmem:[#allocation2 + $0x70] sm:$0xff]
        %v1471 = vld [vmem:[#allocation2 + $0x78] sm:$0xff]
        %1473 = vset.pattern.permute.xlu0 0
        %1474 = vperm.xlu0 %1473, %v771
        %v1475 = vpop.permute.xlu0 %1474
        %1478 = vset.pattern.permute.xlu0 0
        %1479 = vperm.xlu0 %1478, %v773
        %v1480 = vpop.permute.xlu0 %1479
        %1483 = vset.pattern.permute.xlu0 0
        %1484 = vperm.xlu0 %1483, %v775
        %v1485 = vpop.permute.xlu0 %1484
        %1488 = vset.pattern.permute.xlu0 0
        %1489 = vperm.xlu0 %1488, %v777
        %v1490 = vpop.permute.xlu0 %1489
        %v1492 = vmul.f32 %v1475, %v1468
        %v1493 = vmul.f32 %v1480, %v1469
        %v1494 = vmul.f32 %v1485, %v1470
        %v1495 = vmul.f32 %v1490, %v1471
        %v1496 = vadd.f32 %v1492, %v1450
        %v1497 = vadd.f32 %v1493, %v1455
        %v1498 = vadd.f32 %v1494, %v1460
        %v1499 = vadd.f32 %v1495, %v1465
        %1500 = vst.msk [vmem:[#allocation2 + $0x60] sm:$0xff] %vm1136, %v1496
        %1501 = vst.msk [vmem:[#allocation2 + $0x68] sm:$0xff] %vm1136, %v1497
        %1502 = vst.msk [vmem:[#allocation2 + $0x70] sm:$0xff] %vm1136, %v1498
        %1503 = vst.msk [vmem:[#allocation2 + $0x78] sm:$0xff] %vm1136, %v1499
        %p1504 = scmp.eq.s32.totalorder %s22, 1
        // Predicated region
        $region37: #{tpu_custom_call.1} parent=31 // pred_check
          %p1505 = pneg %p1504
        $region38: #{tpu_custom_call.1} parent=31 // pred_check_branch
          %1507 = sbr.rel (%p1505) target = $region40
        $region39: #{tpu_custom_call.1} parent=31 // pred_region
          %v1508 = vld [vmem:[#allocation4] sm:$0xff]
          %v1509 = vld [vmem:[#allocation4 + $0x8] sm:$0xff]
          %v1510 = vld [vmem:[#allocation4 + $0x10] sm:$0xff]
          %v1511 = vld [vmem:[#allocation4 + $0x18] sm:$0xff]
          %v1512 = vld [vmem:[#allocation4 + $0x20] sm:$0xff]
          %v1513 = vld [vmem:[#allocation4 + $0x28] sm:$0xff]
          %v1514 = vld [vmem:[#allocation4 + $0x30] sm:$0xff]
          %v1515 = vld [vmem:[#allocation4 + $0x38] sm:$0xff]
          %v1516 = vld [vmem:[#allocation4 + $0x40] sm:$0xff]
          %v1517 = vld [vmem:[#allocation4 + $0x48] sm:$0xff]
          %v1518 = vld [vmem:[#allocation4 + $0x50] sm:$0xff]
          %v1519 = vld [vmem:[#allocation4 + $0x58] sm:$0xff]
          %v1520 = vld [vmem:[#allocation4 + $0x60] sm:$0xff]
          %v1521 = vld [vmem:[#allocation4 + $0x68] sm:$0xff]
          %v1522 = vld [vmem:[#allocation4 + $0x70] sm:$0xff]
          %v1523 = vld [vmem:[#allocation4 + $0x78] sm:$0xff]
          %v1524 = vrcp.pop %v1508
          %v1525 = vrcp.pop %v1509
          %v1526 = vrcp.pop %v1510
          %v1527 = vrcp.pop %v1511
          %v1528 = vrcp.pop %v1512
          %v1529 = vrcp.pop %v1513
          %v1530 = vrcp.pop %v1514
          %v1531 = vrcp.pop %v1515
          %v1532 = vrcp.pop %v1516
          %v1533 = vrcp.pop %v1517
          %v1534 = vrcp.pop %v1518
          %v1535 = vrcp.pop %v1519
          %v1536 = vrcp.pop %v1520
          %v1537 = vrcp.pop %v1521
          %v1538 = vrcp.pop %v1522
          %v1539 = vrcp.pop %v1523
          %v1540 = vld [vmem:[%s2] sm:$0xff]
          %v1541 = vmul.f32 %v1540, 0.17677669
          %v1542 = vld [vmem:[#allocation2] sm:$0xff]
          %v1543 = vld [vmem:[#allocation2 + $0x8] sm:$0xff]
          %v1544 = vld [vmem:[#allocation2 + $0x10] sm:$0xff]
          %v1545 = vld [vmem:[#allocation2 + $0x18] sm:$0xff]
          %1547 = vset.pattern.permute.xlu0 0
          %1548 = vperm.xlu0 %1547, %v1524
          %v1549 = vpop.permute.xlu0 %1548
          %1552 = vset.pattern.permute.xlu0 0
          %1553 = vperm.xlu0 %1552, %v1525
          %v1554 = vpop.permute.xlu0 %1553
          %1557 = vset.pattern.permute.xlu0 0
          %1558 = vperm.xlu0 %1557, %v1526
          %v1559 = vpop.permute.xlu0 %1558
          %1562 = vset.pattern.permute.xlu0 0
          %1563 = vperm.xlu0 %1562, %v1527
          %v1564 = vpop.permute.xlu0 %1563
          %v1566 = vmul.f32 %v1542, %v1549
          %v1567 = vmul.f32 %v1543, %v1554
          %v1568 = vmul.f32 %v1544, %v1559
          %v1569 = vmul.f32 %v1545, %v1564
          %v1571 = vsel %vm1136, %v1541, 0
          %v1574 = vsel %vm1136, %v1566, 0
          %v1577 = vsel %vm1136, %v1567, 0
          %v1580 = vsel %vm1136, %v1568, 0
          %v1583 = vsel %vm1136, %v1569, 0
          %1585 = vmatprep.subr.mxu0 0.0
          %1586 = vmatpush1.xpose.msra.mxu0 0.0
          %1587 = vmatprep.subr.mxu0 0.0
          %1588 = vmatpush1.xpose.msra.mxu0 0.0
          %1589 = vmatprep.subr.mxu0 0.0
          %1590 = vmatpush1.xpose.msra.mxu0 0.0
          %1591 = vmatprep.subr.mxu0 0.0
          %1592 = vmatpush1.xpose.msra.mxu0 0.0
          %1593 = vmatprep.subr.mxu0 0.0
          %1594 = vmatpush1.xpose.msra.mxu0 0.0
          %1595 = vmatprep.subr.mxu0 0.0
          %1596 = vmatpush1.xpose.msra.mxu0 0.0
          %1597 = vmatprep.subr.mxu0 0.0
          %1598 = vmatpush1.xpose.msra.mxu0 0.0
          %1599 = vmatprep.subr.mxu0 0.0
          %1600 = vmatpush1.xpose.msra.mxu0 0.0
          %1601 = vmatprep.subr.mxu0 0.0
          %1602 = vmatpush1.xpose.msra.mxu0 0.0
          %1603 = vmatprep.subr.mxu0 0.0
          %1604 = vmatpush1.xpose.msra.mxu0 0.0
          %1605 = vmatprep.subr.mxu0 0.0
          %1606 = vmatpush1.xpose.msra.mxu0 0.0
          %1607 = vmatprep.subr.mxu0 0.0
          %1608 = vmatpush1.xpose.msra.mxu0 0.0
          %1609 = vmatprep.subr.mxu0 0.0
          %1610 = vmatpush1.xpose.msra.mxu0 %v1583
          %1611 = vmatprep.subr.mxu0 0.0
          %1612 = vmatpush1.xpose.msra.mxu0 %v1580
          %1613 = vmatprep.subr.mxu0 0.0
          %1614 = vmatpush1.xpose.msra.mxu0 %v1577
          %1615 = vmatprep.subr.mxu0 0.0
          %1616 = vmatpush1.xpose.msra.mxu0 %v1574
          %1617 = vmatprep.subr.mxu0 0.0
          %1618 = vmatpush2.xpose.msra.mxu0 0.0
          %1619 = vmatprep.subr.mxu0 0.0
          %1620 = vmatpush2.xpose.msra.mxu0 0.0
          %1621 = vmatprep.subr.mxu0 0.0
          %1622 = vmatpush2.xpose.msra.mxu0 0.0
          %1623 = vmatprep.subr.mxu0 0.0
          %1624 = vmatpush2.xpose.msra.mxu0 0.0
          %1625 = vmatprep.subr.mxu0 0.0
          %1626 = vmatpush2.xpose.msra.mxu0 0.0
          %1627 = vmatprep.subr.mxu0 0.0
          %1628 = vmatpush2.xpose.msra.mxu0 0.0
          %1629 = vmatprep.subr.mxu0 0.0
          %1630 = vmatpush2.xpose.msra.mxu0 0.0
          %1631 = vmatprep.subr.mxu0 0.0
          %1632 = vmatpush2.xpose.msra.mxu0 0.0
          %1633 = vmatprep.subr.mxu0 0.0
          %1634 = vmatpush2.xpose.msra.mxu0 0.0
          %1635 = vmatprep.subr.mxu0 0.0
          %1636 = vmatpush2.xpose.msra.mxu0 0.0
          %1637 = vmatprep.subr.mxu0 0.0
          %1638 = vmatpush2.xpose.msra.mxu0 0.0
          %1639 = vmatprep.subr.mxu0 0.0
          %1640 = vmatpush2.xpose.msra.mxu0 0.0
          %1641 = vmatprep.subr.mxu0 0.0
          %1642 = vmatpush2.xpose.msra.mxu0 0.0
          %1643 = vmatprep.subr.mxu0 0.0
          %1644 = vmatpush2.xpose.msra.mxu0 0.0
          %1645 = vmatprep.subr.mxu0 0.0
          %1646 = vmatpush2.xpose.msra.mxu0 0.0
          %1647 = vmatprep.subr.mxu0 0.0
          %1648 = vmatpush2.xpose.msra.mxu0 0.0
          %1649 = vmatprep.mubr.f32.mxu0 0.0
          %1650 = vmatmul.mubr.f32.gmra.mxu0 %v1571
          %v1651 = vpop.f32.mrf.mxu0
          %v1652 = vadd.f32 0.0, %v1651
          %v1653 = vpop.f32.mrf.mxu0
          %1654 = vdwg.mxu0
          %v1655 = vld [vmem:[#allocation2 + $0x20] sm:$0xff]
          %v1656 = vld [vmem:[#allocation2 + $0x28] sm:$0xff]
          %v1657 = vld [vmem:[#allocation2 + $0x30] sm:$0xff]
          %v1658 = vld [vmem:[#allocation2 + $0x38] sm:$0xff]
          %1660 = vset.pattern.permute.xlu0 0
          %1661 = vperm.xlu0 %1660, %v1528
          %v1662 = vpop.permute.xlu0 %1661
          %1665 = vset.pattern.permute.xlu0 0
          %1666 = vperm.xlu0 %1665, %v1529
          %v1667 = vpop.permute.xlu0 %1666
          %1670 = vset.pattern.permute.xlu0 0
          %1671 = vperm.xlu0 %1670, %v1530
          %v1672 = vpop.permute.xlu0 %1671
          %1675 = vset.pattern.permute.xlu0 0
          %1676 = vperm.xlu0 %1675, %v1531
          %v1677 = vpop.permute.xlu0 %1676
          %v1679 = vmul.f32 %v1655, %v1662
          %v1680 = vmul.f32 %v1656, %v1667
          %v1681 = vmul.f32 %v1657, %v1672
          %v1682 = vmul.f32 %v1658, %v1677
          %1683 = vrot.lane.b32.xlu0 %v1541, 96
          %v1684 = vpop.permute.xlu0 %1683
          %v1685 = vsel %vm1136, %v1684, 0
          %v1688 = vsel %vm1136, %v1679, 0
          %v1691 = vsel %vm1136, %v1680, 0
          %v1694 = vsel %vm1136, %v1681, 0
          %v1697 = vsel %vm1136, %v1682, 0
          %1699 = vmatprep.subr.mxu0 0.0
          %1700 = vmatpush1.xpose.msra.mxu0 0.0
          %1701 = vmatprep.subr.mxu0 0.0
          %1702 = vmatpush1.xpose.msra.mxu0 0.0
          %1703 = vmatprep.subr.mxu0 0.0
          %1704 = vmatpush1.xpose.msra.mxu0 0.0
          %1705 = vmatprep.subr.mxu0 0.0
          %1706 = vmatpush1.xpose.msra.mxu0 0.0
          %1707 = vmatprep.subr.mxu0 0.0
          %1708 = vmatpush1.xpose.msra.mxu0 0.0
          %1709 = vmatprep.subr.mxu0 0.0
          %1710 = vmatpush1.xpose.msra.mxu0 0.0
          %1711 = vmatprep.subr.mxu0 0.0
          %1712 = vmatpush1.xpose.msra.mxu0 0.0
          %1713 = vmatprep.subr.mxu0 0.0
          %1714 = vmatpush1.xpose.msra.mxu0 0.0
          %1715 = vmatprep.subr.mxu0 0.0
          %1716 = vmatpush1.xpose.msra.mxu0 0.0
          %1717 = vmatprep.subr.mxu0 0.0
          %1718 = vmatpush1.xpose.msra.mxu0 0.0
          %1719 = vmatprep.subr.mxu0 0.0
          %1720 = vmatpush1.xpose.msra.mxu0 0.0
          %1721 = vmatprep.subr.mxu0 0.0
          %1722 = vmatpush1.xpose.msra.mxu0 0.0
          %1723 = vmatprep.subr.mxu0 0.0
          %1724 = vmatpush1.xpose.msra.mxu0 %v1697
          %1725 = vmatprep.subr.mxu0 0.0
          %1726 = vmatpush1.xpose.msra.mxu0 %v1694
          %1727 = vmatprep.subr.mxu0 0.0
          %1728 = vmatpush1.xpose.msra.mxu0 %v1691
          %1729 = vmatprep.subr.mxu0 0.0
          %1730 = vmatpush1.xpose.msra.mxu0 %v1688
          %1731 = vmatprep.subr.mxu0 0.0
          %1732 = vmatpush2.xpose.msra.mxu0 0.0
          %1733 = vmatprep.subr.mxu0 0.0
          %1734 = vmatpush2.xpose.msra.mxu0 0.0
          %1735 = vmatprep.subr.mxu0 0.0
          %1736 = vmatpush2.xpose.msra.mxu0 0.0
          %1737 = vmatprep.subr.mxu0 0.0
          %1738 = vmatpush2.xpose.msra.mxu0 0.0
          %1739 = vmatprep.subr.mxu0 0.0
          %1740 = vmatpush2.xpose.msra.mxu0 0.0
          %1741 = vmatprep.subr.mxu0 0.0
          %1742 = vmatpush2.xpose.msra.mxu0 0.0
          %1743 = vmatprep.subr.mxu0 0.0
          %1744 = vmatpush2.xpose.msra.mxu0 0.0
          %1745 = vmatprep.subr.mxu0 0.0
          %1746 = vmatpush2.xpose.msra.mxu0 0.0
          %1747 = vmatprep.subr.mxu0 0.0
          %1748 = vmatpush2.xpose.msra.mxu0 0.0
          %1749 = vmatprep.subr.mxu0 0.0
          %1750 = vmatpush2.xpose.msra.mxu0 0.0
          %1751 = vmatprep.subr.mxu0 0.0
          %1752 = vmatpush2.xpose.msra.mxu0 0.0
          %1753 = vmatprep.subr.mxu0 0.0
          %1754 = vmatpush2.xpose.msra.mxu0 0.0
          %1755 = vmatprep.subr.mxu0 0.0
          %1756 = vmatpush2.xpose.msra.mxu0 0.0
          %1757 = vmatprep.subr.mxu0 0.0
          %1758 = vmatpush2.xpose.msra.mxu0 0.0
          %1759 = vmatprep.subr.mxu0 0.0
          %1760 = vmatpush2.xpose.msra.mxu0 0.0
          %1761 = vmatprep.subr.mxu0 0.0
          %1762 = vmatpush2.xpose.msra.mxu0 0.0
          %1763 = vmatprep.mubr.f32.mxu0 0.0
          %1764 = vmatmul.mubr.f32.gmra.mxu0 %v1685
          %v1765 = vpop.f32.mrf.mxu0
          %v1766 = vadd.f32 0.0, %v1765
          %v1767 = vpop.f32.mrf.mxu0
          %1768 = vdwg.mxu0
          %v1769 = vld [vmem:[#allocation2 + $0x40] sm:$0xff]
          %v1770 = vld [vmem:[#allocation2 + $0x48] sm:$0xff]
          %v1771 = vld [vmem:[#allocation2 + $0x50] sm:$0xff]
          %v1772 = vld [vmem:[#allocation2 + $0x58] sm:$0xff]
          %1774 = vset.pattern.permute.xlu0 0
          %1775 = vperm.xlu0 %1774, %v1532
          %v1776 = vpop.permute.xlu0 %1775
          %1779 = vset.pattern.permute.xlu0 0
          %1780 = vperm.xlu0 %1779, %v1533
          %v1781 = vpop.permute.xlu0 %1780
          %1784 = vset.pattern.permute.xlu0 0
          %1785 = vperm.xlu0 %1784, %v1534
          %v1786 = vpop.permute.xlu0 %1785
          %1789 = vset.pattern.permute.xlu0 0
          %1790 = vperm.xlu0 %1789, %v1535
          %v1791 = vpop.permute.xlu0 %1790
          %v1793 = vmul.f32 %v1769, %v1776
          %v1794 = vmul.f32 %v1770, %v1781
          %v1795 = vmul.f32 %v1771, %v1786
          %v1796 = vmul.f32 %v1772, %v1791
          %1797 = vrot.lane.b32.xlu0 %v1541, 64
          %v1798 = vpop.permute.xlu0 %1797
          %v1799 = vsel %vm1136, %v1798, 0
          %v1802 = vsel %vm1136, %v1793, 0
          %v1805 = vsel %vm1136, %v1794, 0
          %v1808 = vsel %vm1136, %v1795, 0
          %v1811 = vsel %vm1136, %v1796, 0
          %1813 = vmatprep.subr.mxu0 0.0
          %1814 = vmatpush1.xpose.msra.mxu0 0.0
          %1815 = vmatprep.subr.mxu0 0.0
          %1816 = vmatpush1.xpose.msra.mxu0 0.0
          %1817 = vmatprep.subr.mxu0 0.0
          %1818 = vmatpush1.xpose.msra.mxu0 0.0
          %1819 = vmatprep.subr.mxu0 0.0
          %1820 = vmatpush1.xpose.msra.mxu0 0.0
          %1821 = vmatprep.subr.mxu0 0.0
          %1822 = vmatpush1.xpose.msra.mxu0 0.0
          %1823 = vmatprep.subr.mxu0 0.0
          %1824 = vmatpush1.xpose.msra.mxu0 0.0
          %1825 = vmatprep.subr.mxu0 0.0
          %1826 = vmatpush1.xpose.msra.mxu0 0.0
          %1827 = vmatprep.subr.mxu0 0.0
          %1828 = vmatpush1.xpose.msra.mxu0 0.0
          %1829 = vmatprep.subr.mxu0 0.0
          %1830 = vmatpush1.xpose.msra.mxu0 0.0
          %1831 = vmatprep.subr.mxu0 0.0
          %1832 = vmatpush1.xpose.msra.mxu0 0.0
          %1833 = vmatprep.subr.mxu0 0.0
          %1834 = vmatpush1.xpose.msra.mxu0 0.0
          %1835 = vmatprep.subr.mxu0 0.0
          %1836 = vmatpush1.xpose.msra.mxu0 0.0
          %1837 = vmatprep.subr.mxu0 0.0
          %1838 = vmatpush1.xpose.msra.mxu0 %v1811
          %1839 = vmatprep.subr.mxu0 0.0
          %1840 = vmatpush1.xpose.msra.mxu0 %v1808
          %1841 = vmatprep.subr.mxu0 0.0
          %1842 = vmatpush1.xpose.msra.mxu0 %v1805
          %1843 = vmatprep.subr.mxu0 0.0
          %1844 = vmatpush1.xpose.msra.mxu0 %v1802
          %1845 = vmatprep.subr.mxu0 0.0
          %1846 = vmatpush2.xpose.msra.mxu0 0.0
          %1847 = vmatprep.subr.mxu0 0.0
          %1848 = vmatpush2.xpose.msra.mxu0 0.0
          %1849 = vmatprep.subr.mxu0 0.0
          %1850 = vmatpush2.xpose.msra.mxu0 0.0
          %1851 = vmatprep.subr.mxu0 0.0
          %1852 = vmatpush2.xpose.msra.mxu0 0.0
          %1853 = vmatprep.subr.mxu0 0.0
          %1854 = vmatpush2.xpose.msra.mxu0 0.0
          %1855 = vmatprep.subr.mxu0 0.0
          %1856 = vmatpush2.xpose.msra.mxu0 0.0
          %1857 = vmatprep.subr.mxu0 0.0
          %1858 = vmatpush2.xpose.msra.mxu0 0.0
          %1859 = vmatprep.subr.mxu0 0.0
          %1860 = vmatpush2.xpose.msra.mxu0 0.0
          %1861 = vmatprep.subr.mxu0 0.0
          %1862 = vmatpush2.xpose.msra.mxu0 0.0
          %1863 = vmatprep.subr.mxu0 0.0
          %1864 = vmatpush2.xpose.msra.mxu0 0.0
          %1865 = vmatprep.subr.mxu0 0.0
          %1866 = vmatpush2.xpose.msra.mxu0 0.0
          %1867 = vmatprep.subr.mxu0 0.0
          %1868 = vmatpush2.xpose.msra.mxu0 0.0
          %1869 = vmatprep.subr.mxu0 0.0
          %1870 = vmatpush2.xpose.msra.mxu0 0.0
          %1871 = vmatprep.subr.mxu0 0.0
          %1872 = vmatpush2.xpose.msra.mxu0 0.0
          %1873 = vmatprep.subr.mxu0 0.0
          %1874 = vmatpush2.xpose.msra.mxu0 0.0
          %1875 = vmatprep.subr.mxu0 0.0
          %1876 = vmatpush2.xpose.msra.mxu0 0.0
          %1877 = vmatprep.mubr.f32.mxu0 0.0
          %1878 = vmatmul.mubr.f32.gmra.mxu0 %v1799
          %v1879 = vpop.f32.mrf.mxu0
          %v1880 = vadd.f32 0.0, %v1879
          %v1881 = vpop.f32.mrf.mxu0
          %1882 = vdwg.mxu0
          %v1883 = vld [vmem:[#allocation2 + $0x60] sm:$0xff]
          %v1884 = vld [vmem:[#allocation2 + $0x68] sm:$0xff]
          %v1885 = vld [vmem:[#allocation2 + $0x70] sm:$0xff]
          %v1886 = vld [vmem:[#allocation2 + $0x78] sm:$0xff]
          %1888 = vset.pattern.permute.xlu0 0
          %1889 = vperm.xlu0 %1888, %v1536
          %v1890 = vpop.permute.xlu0 %1889
          %1893 = vset.pattern.permute.xlu0 0
          %1894 = vperm.xlu0 %1893, %v1537
          %v1895 = vpop.permute.xlu0 %1894
          %1898 = vset.pattern.permute.xlu0 0
          %1899 = vperm.xlu0 %1898, %v1538
          %v1900 = vpop.permute.xlu0 %1899
          %1903 = vset.pattern.permute.xlu0 0
          %1904 = vperm.xlu0 %1903, %v1539
          %v1905 = vpop.permute.xlu0 %1904
          %v1907 = vmul.f32 %v1883, %v1890
          %v1908 = vmul.f32 %v1884, %v1895
          %v1909 = vmul.f32 %v1885, %v1900
          %v1910 = vmul.f32 %v1886, %v1905
          %1911 = vrot.lane.b32.xlu0 %v1541, 32
          %v1912 = vpop.permute.xlu0 %1911
          %v1913 = vsel %vm1136, %v1912, 0
          %v1916 = vsel %vm1136, %v1907, 0
          %v1919 = vsel %vm1136, %v1908, 0
          %v1922 = vsel %vm1136, %v1909, 0
          %v1925 = vsel %vm1136, %v1910, 0
          %1927 = vmatprep.subr.mxu0 0.0
          %1928 = vmatpush1.xpose.msra.mxu0 0.0
          %1929 = vmatprep.subr.mxu0 0.0
          %1930 = vmatpush1.xpose.msra.mxu0 0.0
          %1931 = vmatprep.subr.mxu0 0.0
          %1932 = vmatpush1.xpose.msra.mxu0 0.0
          %1933 = vmatprep.subr.mxu0 0.0
          %1934 = vmatpush1.xpose.msra.mxu0 0.0
          %1935 = vmatprep.subr.mxu0 0.0
          %1936 = vmatpush1.xpose.msra.mxu0 0.0
          %1937 = vmatprep.subr.mxu0 0.0
          %1938 = vmatpush1.xpose.msra.mxu0 0.0
          %1939 = vmatprep.subr.mxu0 0.0
          %1940 = vmatpush1.xpose.msra.mxu0 0.0
          %1941 = vmatprep.subr.mxu0 0.0
          %1942 = vmatpush1.xpose.msra.mxu0 0.0
          %1943 = vmatprep.subr.mxu0 0.0
          %1944 = vmatpush1.xpose.msra.mxu0 0.0
          %1945 = vmatprep.subr.mxu0 0.0
          %1946 = vmatpush1.xpose.msra.mxu0 0.0
          %1947 = vmatprep.subr.mxu0 0.0
          %1948 = vmatpush1.xpose.msra.mxu0 0.0
          %1949 = vmatprep.subr.mxu0 0.0
          %1950 = vmatpush1.xpose.msra.mxu0 0.0
          %1951 = vmatprep.subr.mxu0 0.0
          %1952 = vmatpush1.xpose.msra.mxu0 %v1925
          %1953 = vmatprep.subr.mxu0 0.0
          %1954 = vmatpush1.xpose.msra.mxu0 %v1922
          %1955 = vmatprep.subr.mxu0 0.0
          %1956 = vmatpush1.xpose.msra.mxu0 %v1919
          %1957 = vmatprep.subr.mxu0 0.0
          %1958 = vmatpush1.xpose.msra.mxu0 %v1916
          %1959 = vmatprep.subr.mxu0 0.0
          %1960 = vmatpush2.xpose.msra.mxu0 0.0
          %1961 = vmatprep.subr.mxu0 0.0
          %1962 = vmatpush2.xpose.msra.mxu0 0.0
          %1963 = vmatprep.subr.mxu0 0.0
          %1964 = vmatpush2.xpose.msra.mxu0 0.0
          %1965 = vmatprep.subr.mxu0 0.0
          %1966 = vmatpush2.xpose.msra.mxu0 0.0
          %1967 = vmatprep.subr.mxu0 0.0
          %1968 = vmatpush2.xpose.msra.mxu0 0.0
          %1969 = vmatprep.subr.mxu0 0.0
          %1970 = vmatpush2.xpose.msra.mxu0 0.0
          %1971 = vmatprep.subr.mxu0 0.0
          %1972 = vmatpush2.xpose.msra.mxu0 0.0
          %1973 = vmatprep.subr.mxu0 0.0
          %1974 = vmatpush2.xpose.msra.mxu0 0.0
          %1975 = vmatprep.subr.mxu0 0.0
          %1976 = vmatpush2.xpose.msra.mxu0 0.0
          %1977 = vmatprep.subr.mxu0 0.0
          %1978 = vmatpush2.xpose.msra.mxu0 0.0
          %1979 = vmatprep.subr.mxu0 0.0
          %1980 = vmatpush2.xpose.msra.mxu0 0.0
          %1981 = vmatprep.subr.mxu0 0.0
          %1982 = vmatpush2.xpose.msra.mxu0 0.0
          %1983 = vmatprep.subr.mxu0 0.0
          %1984 = vmatpush2.xpose.msra.mxu0 0.0
          %1985 = vmatprep.subr.mxu0 0.0
          %1986 = vmatpush2.xpose.msra.mxu0 0.0
          %1987 = vmatprep.subr.mxu0 0.0
          %1988 = vmatpush2.xpose.msra.mxu0 0.0
          %1989 = vmatprep.subr.mxu0 0.0
          %1990 = vmatpush2.xpose.msra.mxu0 0.0
          %1991 = vmatprep.mubr.f32.mxu0 0.0
          %1992 = vmatmul.mubr.f32.gmra.mxu0 %v1913
          %v1993 = vpop.f32.mrf.mxu0
          %v1994 = vadd.f32 0.0, %v1993
          %v1995 = vpop.f32.mrf.mxu0
          %1996 = vdwg.mxu0
          %1998 = vrot.lane.b32.xlu0 %v1766, 32
          %v1999 = vpop.permute.xlu0 %1998
          %2002 = vrot.lane.b32.xlu0 %v1880, 64
          %v2003 = vpop.permute.xlu0 %2002
          %2006 = vrot.lane.b32.xlu0 %v1994, 96
          %v2007 = vpop.permute.xlu0 %2006
          %v2009 = vsel %vm1136, %v1652, %v1999
          %vm2010 = vcmask 523264
          %v2011 = vsel %vm2010, %v2009, %v2003
          %vm2012 = vcmask 785408
          %v2013 = vsel %vm2012, %v2011, %v2007
          %2014 = vst [vmem:[%s183] sm:$0xff] %v2013
        $region40: #{tpu_custom_call.1} parent=31 // pred_fallthru
          _
        %s2015 = sand.u32 %s107, 1
        %s2016 = scalar_lea.sflag [#allocation6], %s2015
        %s2017 = sand.u32 %s107, 1
        %s2018 = smul.addr %s2017, 8
        %s2019 = scalar_lea.vmem [#allocation5], %s2018
        // Predicated region
        $region41: #{tpu_custom_call.1} parent=31 // pred_check
          %p2020 = pneg %p117
        $region42: #{tpu_custom_call.1} parent=31 // pred_check_branch
          %2022 = sbr.rel (%p2020) target = $region44
        $region43: #{tpu_custom_call.1} parent=31 // pred_region
          %s2024 = ssub.s32 128, 128
          %2025 = vsyncadd %s2016, %s2024
          %s2026 = smul.addr %s21, 128
          %s2027 = scalar_lea.hbm %s3, %s2026
          %s2029 = sshll.u32 %s2019, 4
          %s2030 = int_to_ptr.vmem [resolvable:$true] %s2029
          %2032 = dma.vmem_to_hbm [thread:$0]  %s2030, 128, %s2027, %s2016
        $region44: #{tpu_custom_call.1} parent=31 // pred_fallthru
          _
      $region32: #{tpu_custom_call.1} parent=5 // pred_fallthru
        _
      %p2033 = scmp.le.s32.totalorder 2, %s12
      // Predicated region
      $region45: #{tpu_custom_call.1} parent=5 // pred_check
        %p2034 = pneg %p2033
      $region46: #{tpu_custom_call.1} parent=5 // pred_check_branch
        %2036 = sbr.rel (%p2034) target = $region48
      $region47: #{tpu_custom_call.1} parent=5 // pred_region
        %s2037 = ssub.s32 %s12, 2
        // Predicated region
        $region49: #{tpu_custom_call.1} parent=47 // pred_check
          %p2038 = pneg %p123
        $region50: #{tpu_custom_call.1} parent=47 // pred_check_branch
          %2040 = sbr.rel (%p2038) target = $region52
        $region51: #{tpu_custom_call.1} parent=47 // pred_region
          %s2041 = sand.u32 %s108, 1
          %s2042 = scalar_lea.sflag [#allocation6], %s2041
          %s2043 = sand.u32 %s108, 1
          %s2044 = smul.addr %s2043, 8
          %s2045 = scalar_lea.vmem [#allocation5], %s2044
          %2046 = dma.done %s2042, 128
        $region52: #{tpu_custom_call.1} parent=47 // pred_fallthru
          _
      $region48: #{tpu_custom_call.1} parent=5 // pred_fallthru
        _
    $region6: #{tpu_custom_call.1} parent=1 // loop_footer
      %s16 = sadd.s32 1, %s12
    $region7: #{tpu_custom_call.1} parent=1 // loop_footer_branch
      %11 = sbr.rel target = $region3
    $region8: #{tpu_custom_call.1} parent=1 // loop_exit
      _
    %2047 = vsyncpa [#allocation6], 1
    %s2048 = scalar_lea.sflag [#allocation6], 1
    %2049 = vsyncpa %s2048, 1

</llo_original>
